<compile_context>
chip_gen: v5e
topology: v5e:2x2
jax: 0.10.0
libtpu: 0.0.40
codegen_flags: <defaults>
</compile_context>

<pallas_src>
import functools

import jax
import jax.numpy as jnp
from jax import lax
from jax.experimental import pallas as pl
from jax.experimental.pallas import tpu as pltpu

EPS_L2 = 1e-12  # F.normalize-style clamp


def _l2n(x):
    n = jnp.sqrt(jnp.sum(x * x, axis=-1, keepdims=True))
    return x / jnp.maximum(n, EPS_L2)


# ---------------------------------------------------------------------------
# Pallas kernel 1: 3x3 same-padding conv (+bias, optional ReLU), NHWC.
# One grid step per batch element; the conv is 9 accumulated MXU matmuls over
# shifted (H, W) windows of the halo-padded input tile (fused im2col).
# ---------------------------------------------------------------------------
def _conv3x3_kernel(xp_ref, w_ref, b_ref, o_ref, *, relu):
    _, hp, wp, cin = xp_ref.shape
    h, w = hp - 2, wp - 2
    cout = o_ref.shape[-1]

    x = xp_ref[0]                                       # (hp, wp, cin) in vregs
    acc = jnp.zeros((h * w, cout), jnp.float32)
    for di in range(3):
        for dj in range(3):
            patch = x[di:di + h, dj:dj + w, :]          # static slice of a value
            acc = acc + jnp.dot(patch.reshape(h * w, cin),
                                w_ref[di * 3 + dj],
                                preferred_element_type=jnp.float32)
    acc = acc + b_ref[...]
    if relu:
        acc = jnp.maximum(acc, 0.0)
    o_ref[0] = acc.astype(o_ref.dtype)


def conv3x3_nhwc(x, wmat, bias, relu=False):
    """x: (B, H, W, Cin) NHWC; wmat: (9, Cin, Cout); bias: (1, Cout)."""
    b, h, w, cin = x.shape
    cout = wmat.shape[-1]
    xp = jnp.pad(x, ((0, 0), (1, 1), (1, 1), (0, 0)))
    out = pl.pallas_call(
        functools.partial(_conv3x3_kernel, relu=relu),
        out_shape=jax.ShapeDtypeStruct((b, h * w, cout), jnp.float32),
        grid=(b,),
        in_specs=[
            pl.BlockSpec((1, h + 2, w + 2, cin), lambda i: (i, 0, 0, 0)),
            pl.BlockSpec((9, cin, cout), lambda i: (0, 0, 0)),   # resident
            pl.BlockSpec((1, cout), lambda i: (0, 0)),           # resident
        ],
        out_specs=pl.BlockSpec((1, h * w, cout), lambda i: (i, 0, 0)),
        compiler_params=pltpu.CompilerParams(
            dimension_semantics=("parallel",)),
    )(xp, wmat, bias)
    return out.reshape(b, h, w, cout)


# ---------------------------------------------------------------------------
# Pallas kernel 2: fused saliency + clustering, one grid step per batch
# element, everything in lane-dense (K, N) / (1, N) orientation.
# ---------------------------------------------------------------------------
def _saliency_math(z, bb, num_pixel):
    # z: (N, d) raw tokens; bb: (1, N) boundary-box indicator.
    proto = lax.dot_general(bb, z, (((1,), (0,)), ((), ())),
                            preferred_element_type=jnp.float32) / num_pixel
    proto = _l2n(proto)                                          # (1, d)
    zn = _l2n(z)                                                 # (N, d)
    sim = lax.dot_general(proto, zn, (((1,), (1,)), ((), ())),
                          preferred_element_type=jnp.float32)    # (1, N)
    smin = jnp.min(sim, axis=-1, keepdims=True)
    smax = jnp.max(sim, axis=-1, keepdims=True)
    # Tiny epsilon guards the degenerate all-equal case (the PyTorch reference
    # divides by (max - min) directly and would NaN there).
    mask = 1.0 - (sim - smin) / jnp.maximum(smax - smin, 1e-12)
    return mask, zn


def _cluster_math(z, zn, proto0, n_iters, sk_iters, sk_eps):
    n, _ = z.shape
    k = proto0.shape[0]
    protos = _l2n(proto0)                                        # (K, d)
    row = lax.broadcasted_iota(jnp.int32, (k, n), 0)
    q = jnp.zeros((k, n), jnp.float32)
    idx = jnp.zeros((1, n), jnp.int32)
    inv_eps = 1.0 / sk_eps
    for _ in range(n_iters):
        # s[k, n] = <l2n(z_n), proto_k>
        s = lax.dot_general(protos, zn, (((1,), (1,)), ((), ())),
                            preferred_element_type=jnp.float32)  # (K, N)
        # softmax over clusters (axis 0)
        smax = jnp.max(s, axis=0, keepdims=True)
        e = jnp.exp(s - smax)
        s = e * pl.reciprocal(jnp.sum(e, axis=0, keepdims=True), approx=True)
        # Sinkhorn-Knopp; the textbook /K, /N rescalings cancel against the
        # adjacent normalizations (and the trailing *N), so only alternating
        # row/column normalizations remain.
        p = jnp.exp(s * inv_eps)
        for _ in range(sk_iters):
            p = p * pl.reciprocal(jnp.sum(p, axis=1, keepdims=True),
                                  approx=True)   # per-cluster (rows)
            p = p * pl.reciprocal(jnp.sum(p, axis=0, keepdims=True),
                                  approx=True)   # per-token (columns)
        q = p                                                    # (K, N)
        # argmax over clusters (first maximal index, like torch.argmax)
        qmax = jnp.max(q, axis=0, keepdims=True)
        idx = jnp.min(jnp.where(q >= qmax, row, k), axis=0, keepdims=True)
        one_hot = (row == idx).astype(jnp.float32)               # (K, N)
        counts = jnp.sum(one_hot, axis=1, keepdims=True)         # (K, 1)
        new_p = lax.dot_general(one_hot, z, (((1,), (0,)), ((), ())),
                                preferred_element_type=jnp.float32)  # (K, d)
        # counts==0 rows have an all-zero numerator -> matches nan_to_num(0/0)=0.
        new_p = new_p / jnp.maximum(counts, 1.0)
        protos = _l2n(new_p)
    return q, idx


def _saliency_cluster_kernel(z_ref, bb_ref, proto_ref,
                             mask_ref, logits_ref, idx_ref, *,
                             num_pixel, n_iters, sk_iters, sk_eps):
    z = z_ref[0]                                                 # (N, d)
    mask, zn = _saliency_math(z, bb_ref[...], num_pixel)
    mask_ref[0] = mask                                           # (1, N) lane-dense
    q, idx = _cluster_math(z, zn, proto_ref[0], n_iters, sk_iters, sk_eps)
    logits_ref[0] = q                                            # (K, N) lane-dense
    idx_ref[0] = idx                                             # (1, N)


def _saliency_kernel(z_ref, bb_ref, mask_ref, *, num_pixel):
    mask, _ = _saliency_math(z_ref[0], bb_ref[...], num_pixel)
    mask_ref[0] = mask


def saliency_and_cluster(z_tok, bbox_row, num_pixel, proto_init,
                         n_iters=3, sk_iters=3, sk_eps=0.05):
    b, n, d = z_tok.shape
    k = proto_init.shape[1]
    return pl.pallas_call(
        functools.partial(_saliency_cluster_kernel, num_pixel=num_pixel,
                          n_iters=n_iters, sk_iters=sk_iters, sk_eps=sk_eps),
        out_shape=(
            jax.ShapeDtypeStruct((b, 1, n), jnp.float32),    # mask
            jax.ShapeDtypeStruct((b, k, n), jnp.float32),    # logits
            jax.ShapeDtypeStruct((b, 1, n), jnp.int32),      # indexes
        ),
        grid=(b,),
        in_specs=[
            pl.BlockSpec((1, n, d), lambda i: (i, 0, 0)),
            pl.BlockSpec((1, n), lambda i: (0, 0)),          # shared bbox
            pl.BlockSpec((1, k, d), lambda i: (i, 0, 0)),
        ],
        out_specs=(
            pl.BlockSpec((1, 1, n), lambda i: (i, 0, 0)),
            pl.BlockSpec((1, k, n), lambda i: (i, 0, 0)),
            pl.BlockSpec((1, 1, n), lambda i: (i, 0, 0)),
        ),
        compiler_params=pltpu.CompilerParams(
            dimension_semantics=("parallel",)),
    )(z_tok, bbox_row, proto_init)


def saliency_only(z_tok, bbox_row, num_pixel):
    b, n, d = z_tok.shape
    return pl.pallas_call(
        functools.partial(_saliency_kernel, num_pixel=num_pixel),
        out_shape=jax.ShapeDtypeStruct((b, 1, n), jnp.float32),
        grid=(b,),
        in_specs=[
            pl.BlockSpec((1, n, d), lambda i: (i, 0, 0)),
            pl.BlockSpec((1, n), lambda i: (0, 0)),
        ],
        out_specs=pl.BlockSpec((1, 1, n), lambda i: (i, 0, 0)),
        compiler_params=pltpu.CompilerParams(
            dimension_semantics=("parallel",)),
    )(z_tok, bbox_row)


# ---------------------------------------------------------------------------
# ClusterNet_BGC_NS
# ---------------------------------------------------------------------------
class ClusterNetBGCNS:
    def __init__(self, n_input, n_z, n_clusters, hidden=16, key=None):
        self.n_z = n_z
        self.n_clusters = n_clusters
        key = jax.random.PRNGKey(42) if key is None else key
        ks = jax.random.split(key, 4)

        def init_conv(k, cout, cin):
            scale = 1.0 / (3.0 * float(cin) ** 0.5)
            w = jax.random.normal(k, (cout, cin, 3, 3), jnp.float32) * scale
            b = jnp.zeros((cout,), jnp.float32)
            # Pre-pack once to the kernel's channel-last tap layout:
            # (kh*3+kw, Cin, Cout) weights and (1, Cout) bias.
            wmat = jnp.transpose(w, (2, 3, 1, 0)).reshape(9, cin, cout)
            return wmat, b.reshape(1, cout)

        # simple AE_NS stand-in (see TODO at top of file)
        self.enc1 = init_conv(ks[0], hidden, n_input)
        self.enc2 = init_conv(ks[1], n_z, hidden)
        self.dec1 = init_conv(ks[2], hidden, n_z)
        self.dec2 = init_conv(ks[3], n_input, hidden)

    def auto_encoder(self, x_nchw):
        # NCHW -> NHWC once; everything inside stays channel-last.
        x = jnp.transpose(x_nchw, (0, 2, 3, 1))
        h1 = conv3x3_nhwc(x, *self.enc1, relu=True)
        z = conv3x3_nhwc(h1, *self.enc2, relu=False)          # (b, h, w, n_z)
        d1 = conv3x3_nhwc(z, *self.dec1, relu=True)
        x_bar = conv3x3_nhwc(d1, *self.dec2, relu=False)      # (b, h, w, n_input)
        return jnp.transpose(x_bar, (0, 3, 1, 2)), z

    @staticmethod
    def _init_boundary_box(h, w, duration=3):
        inner = jnp.zeros((h - 2 * duration, w - 2 * duration), jnp.float32)
        bbox = jnp.pad(inner, ((duration, duration), (duration, duration)),
                       constant_values=1.0)
        num_pixel = float(h * w - (h - 2 * duration) * (w - 2 * duration))
        return bbox.reshape(1, h * w), num_pixel

    def forward(self, x, key, pretrain_process=False):
        x_bar, z_nhwc = self.auto_encoder(x)
        b, h, w, c = z_nhwc.shape
        z_tok = z_nhwc.reshape(b, h * w, c)                    # b (h w) c
        bbox, num_pixel = self._init_boundary_box(h, w)
        z_nchw = jnp.transpose(z_nhwc, (0, 3, 1, 2))           # boundary layout

        if not pretrain_process:
            proto0 = jax.random.normal(key, (b, self.n_clusters, self.n_z),
                                       jnp.float32)
            mask_ln, logits_kn, idx_ln = saliency_and_cluster(
                z_tok, bbox, num_pixel, proto0)
            mask = jnp.transpose(mask_ln, (0, 2, 1))           # (b, N, 1)
            logits = logits_kn.reshape(b, self.n_clusters, h, w)
            indexes = idx_ln.reshape(b, h, w)
            preds = {"logits": logits, "indexes": indexes}
            return x_bar, z_nchw, mask, preds

        mask = jnp.transpose(saliency_only(z_tok, bbox, num_pixel), (0, 2, 1))
        return x_bar, z_nchw, mask


# ---------------------------------------------------------------------------
if __name__ == "__main__":
    B, C_IN, H, W = 2, 4, 16, 16
    N_Z, N_CLUSTERS = 32, 4

    key = jax.random.PRNGKey(0)
    k_x, k_params, k_proto = jax.random.split(key, 3)
    x = jax.random.normal(k_x, (B, C_IN, H, W), jnp.float32)

    net = ClusterNetBGCNS(C_IN, N_Z, N_CLUSTERS, hidden=16, key=k_params)
    x_bar, z, mask, preds = net.forward(x, k_proto, pretrain_process=False)

    jax.block_until_ready((x_bar, z, mask, preds["logits"], preds["indexes"]))

    assert x_bar.shape == (B, C_IN, H, W)
    assert z.shape == (B, N_Z, H, W)
    assert mask.shape == (B, H * W, 1)
    assert preds["logits"].shape == (B, N_CLUSTERS, H, W)
    assert preds["indexes"].shape == (B, H, W)
    assert bool(jnp.isfinite(x_bar).all())
    assert bool(jnp.isfinite(mask).all())
    assert bool(jnp.isfinite(preds["logits"]).all())
    assert int(preds["indexes"].min()) >= 0
    assert int(preds["indexes"].max()) < N_CLUSTERS
    print("KERNEL_OK")
</pallas_src>

<mosaic_0001>
module attributes {stable_mosaic.version = 11 : i64} {
  func.func @_conv3x3_kernel(%arg0: i32, %arg1: memref<1x18x18x4xf32, #tpu.memory_space<vmem>>, %arg2: memref<9x4x16xf32, #tpu.memory_space<vmem>>, %arg3: memref<1x16xf32, #tpu.memory_space<vmem>>, %arg4: memref<1x256x16xf32, #tpu.memory_space<vmem>>) attributes {dimension_semantics = [#tpu.dimension_semantics<parallel>], iteration_bounds = array<i64: 2>, scalar_prefetch = 0 : i64, scratch_operands = 0 : i64, tpu.core_type = #tpu.core_type<tc>, window_params = [{transform_indices = @transform_0, window_bounds = array<i64: 1, 18, 18, 4>}, {pipeline_mode = #tpu.pipeline_mode<synchronous>, transform_indices = @transform_1, window_bounds = array<i64: 9, 4, 16>}, {pipeline_mode = #tpu.pipeline_mode<synchronous>, transform_indices = @transform_2, window_bounds = array<i64: 1, 16>}, {transform_indices = @transform_3, window_bounds = array<i64: 1, 256, 16>}]} {
    %c0 = arith.constant 0 : index
    %c0_0 = arith.constant 0 : index
    %c0_1 = arith.constant 0 : index
    %c0_2 = arith.constant 0 : index
    %0 = vector.load %arg1[%c0, %c0_0, %c0_1, %c0_2] : memref<1x18x18x4xf32, #tpu.memory_space<vmem>>, vector<1x18x18x4xf32>
    %1 = vector.shape_cast %0 : vector<1x18x18x4xf32> to vector<18x18x4xf32>
    %cst = arith.constant 0.000000e+00 : f32
    %2 = vector.broadcast %cst : f32 to vector<256x16xf32>
    %3 = vector.extract_strided_slice %1 {offsets = [0, 0, 0], sizes = [16, 16, 4], strides = [1, 1, 1]} : vector<18x18x4xf32> to vector<16x16x4xf32>
    %4 = vector.shape_cast %3 : vector<16x16x4xf32> to vector<256x4xf32>
    %c0_3 = arith.constant 0 : index
    %c0_4 = arith.constant 0 : index
    %c0_5 = arith.constant 0 : index
    %5 = vector.load %arg2[%c0_3, %c0_4, %c0_5] : memref<9x4x16xf32, #tpu.memory_space<vmem>>, vector<1x4x16xf32>
    %6 = vector.shape_cast %5 : vector<1x4x16xf32> to vector<4x16xf32>
    %cst_6 = arith.constant dense<0.000000e+00> : vector<256x16xf32>
    %7 = tpu.matmul %4, %6, %cst_6 {dimension_numbers = #tpu.dot_dimension_numbers<[1], [0], [0], [1], [0, 0, 1, 1], [], []>} : vector<256x4xf32>, vector<4x16xf32>, vector<256x16xf32> -> vector<256x16xf32>
    %8 = arith.addf %2, %7 : vector<256x16xf32>
    %9 = vector.extract_strided_slice %1 {offsets = [0, 1, 0], sizes = [16, 16, 4], strides = [1, 1, 1]} : vector<18x18x4xf32> to vector<16x16x4xf32>
    %10 = vector.shape_cast %9 : vector<16x16x4xf32> to vector<256x4xf32>
    %c1 = arith.constant 1 : index
    %c0_7 = arith.constant 0 : index
    %c0_8 = arith.constant 0 : index
    %11 = vector.load %arg2[%c1, %c0_7, %c0_8] : memref<9x4x16xf32, #tpu.memory_space<vmem>>, vector<1x4x16xf32>
    %12 = vector.shape_cast %11 : vector<1x4x16xf32> to vector<4x16xf32>
    %cst_9 = arith.constant dense<0.000000e+00> : vector<256x16xf32>
    %13 = tpu.matmul %10, %12, %cst_9 {dimension_numbers = #tpu.dot_dimension_numbers<[1], [0], [0], [1], [0, 0, 1, 1], [], []>} : vector<256x4xf32>, vector<4x16xf32>, vector<256x16xf32> -> vector<256x16xf32>
    %14 = arith.addf %8, %13 : vector<256x16xf32>
    %15 = vector.extract_strided_slice %1 {offsets = [0, 2, 0], sizes = [16, 16, 4], strides = [1, 1, 1]} : vector<18x18x4xf32> to vector<16x16x4xf32>
    %16 = vector.shape_cast %15 : vector<16x16x4xf32> to vector<256x4xf32>
    %c2 = arith.constant 2 : index
    %c0_10 = arith.constant 0 : index
    %c0_11 = arith.constant 0 : index
    %17 = vector.load %arg2[%c2, %c0_10, %c0_11] : memref<9x4x16xf32, #tpu.memory_space<vmem>>, vector<1x4x16xf32>
    %18 = vector.shape_cast %17 : vector<1x4x16xf32> to vector<4x16xf32>
    %cst_12 = arith.constant dense<0.000000e+00> : vector<256x16xf32>
    %19 = tpu.matmul %16, %18, %cst_12 {dimension_numbers = #tpu.dot_dimension_numbers<[1], [0], [0], [1], [0, 0, 1, 1], [], []>} : vector<256x4xf32>, vector<4x16xf32>, vector<256x16xf32> -> vector<256x16xf32>
    %20 = arith.addf %14, %19 : vector<256x16xf32>
    %21 = vector.extract_strided_slice %1 {offsets = [1, 0, 0], sizes = [16, 16, 4], strides = [1, 1, 1]} : vector<18x18x4xf32> to vector<16x16x4xf32>
    %22 = vector.shape_cast %21 : vector<16x16x4xf32> to vector<256x4xf32>
    %c3 = arith.constant 3 : index
    %c0_13 = arith.constant 0 : index
    %c0_14 = arith.constant 0 : index
    %23 = vector.load %arg2[%c3, %c0_13, %c0_14] : memref<9x4x16xf32, #tpu.memory_space<vmem>>, vector<1x4x16xf32>
    %24 = vector.shape_cast %23 : vector<1x4x16xf32> to vector<4x16xf32>
    %cst_15 = arith.constant dense<0.000000e+00> : vector<256x16xf32>
    %25 = tpu.matmul %22, %24, %cst_15 {dimension_numbers = #tpu.dot_dimension_numbers<[1], [0], [0], [1], [0, 0, 1, 1], [], []>} : vector<256x4xf32>, vector<4x16xf32>, vector<256x16xf32> -> vector<256x16xf32>
    %26 = arith.addf %20, %25 : vector<256x16xf32>
    %27 = vector.extract_strided_slice %1 {offsets = [1, 1, 0], sizes = [16, 16, 4], strides = [1, 1, 1]} : vector<18x18x4xf32> to vector<16x16x4xf32>
    %28 = vector.shape_cast %27 : vector<16x16x4xf32> to vector<256x4xf32>
    %c4 = arith.constant 4 : index
    %c0_16 = arith.constant 0 : index
    %c0_17 = arith.constant 0 : index
    %29 = vector.load %arg2[%c4, %c0_16, %c0_17] : memref<9x4x16xf32, #tpu.memory_space<vmem>>, vector<1x4x16xf32>
    %30 = vector.shape_cast %29 : vector<1x4x16xf32> to vector<4x16xf32>
    %cst_18 = arith.constant dense<0.000000e+00> : vector<256x16xf32>
    %31 = tpu.matmul %28, %30, %cst_18 {dimension_numbers = #tpu.dot_dimension_numbers<[1], [0], [0], [1], [0, 0, 1, 1], [], []>} : vector<256x4xf32>, vector<4x16xf32>, vector<256x16xf32> -> vector<256x16xf32>
    %32 = arith.addf %26, %31 : vector<256x16xf32>
    %33 = vector.extract_strided_slice %1 {offsets = [1, 2, 0], sizes = [16, 16, 4], strides = [1, 1, 1]} : vector<18x18x4xf32> to vector<16x16x4xf32>
    %34 = vector.shape_cast %33 : vector<16x16x4xf32> to vector<256x4xf32>
    %c5 = arith.constant 5 : index
    %c0_19 = arith.constant 0 : index
    %c0_20 = arith.constant 0 : index
    %35 = vector.load %arg2[%c5, %c0_19, %c0_20] : memref<9x4x16xf32, #tpu.memory_space<vmem>>, vector<1x4x16xf32>
    %36 = vector.shape_cast %35 : vector<1x4x16xf32> to vector<4x16xf32>
    %cst_21 = arith.constant dense<0.000000e+00> : vector<256x16xf32>
    %37 = tpu.matmul %34, %36, %cst_21 {dimension_numbers = #tpu.dot_dimension_numbers<[1], [0], [0], [1], [0, 0, 1, 1], [], []>} : vector<256x4xf32>, vector<4x16xf32>, vector<256x16xf32> -> vector<256x16xf32>
    %38 = arith.addf %32, %37 : vector<256x16xf32>
    %39 = vector.extract_strided_slice %1 {offsets = [2, 0, 0], sizes = [16, 16, 4], strides = [1, 1, 1]} : vector<18x18x4xf32> to vector<16x16x4xf32>
    %40 = vector.shape_cast %39 : vector<16x16x4xf32> to vector<256x4xf32>
    %c6 = arith.constant 6 : index
    %c0_22 = arith.constant 0 : index
    %c0_23 = arith.constant 0 : index
    %41 = vector.load %arg2[%c6, %c0_22, %c0_23] : memref<9x4x16xf32, #tpu.memory_space<vmem>>, vector<1x4x16xf32>
    %42 = vector.shape_cast %41 : vector<1x4x16xf32> to vector<4x16xf32>
    %cst_24 = arith.constant dense<0.000000e+00> : vector<256x16xf32>
    %43 = tpu.matmul %40, %42, %cst_24 {dimension_numbers = #tpu.dot_dimension_numbers<[1], [0], [0], [1], [0, 0, 1, 1], [], []>} : vector<256x4xf32>, vector<4x16xf32>, vector<256x16xf32> -> vector<256x16xf32>
    %44 = arith.addf %38, %43 : vector<256x16xf32>
    %45 = vector.extract_strided_slice %1 {offsets = [2, 1, 0], sizes = [16, 16, 4], strides = [1, 1, 1]} : vector<18x18x4xf32> to vector<16x16x4xf32>
    %46 = vector.shape_cast %45 : vector<16x16x4xf32> to vector<256x4xf32>
    %c7 = arith.constant 7 : index
    %c0_25 = arith.constant 0 : index
    %c0_26 = arith.constant 0 : index
    %47 = vector.load %arg2[%c7, %c0_25, %c0_26] : memref<9x4x16xf32, #tpu.memory_space<vmem>>, vector<1x4x16xf32>
    %48 = vector.shape_cast %47 : vector<1x4x16xf32> to vector<4x16xf32>
    %cst_27 = arith.constant dense<0.000000e+00> : vector<256x16xf32>
    %49 = tpu.matmul %46, %48, %cst_27 {dimension_numbers = #tpu.dot_dimension_numbers<[1], [0], [0], [1], [0, 0, 1, 1], [], []>} : vector<256x4xf32>, vector<4x16xf32>, vector<256x16xf32> -> vector<256x16xf32>
    %50 = arith.addf %44, %49 : vector<256x16xf32>
    %51 = vector.extract_strided_slice %1 {offsets = [2, 2, 0], sizes = [16, 16, 4], strides = [1, 1, 1]} : vector<18x18x4xf32> to vector<16x16x4xf32>
    %52 = vector.shape_cast %51 : vector<16x16x4xf32> to vector<256x4xf32>
    %c8 = arith.constant 8 : index
    %c0_28 = arith.constant 0 : index
    %c0_29 = arith.constant 0 : index
    %53 = vector.load %arg2[%c8, %c0_28, %c0_29] : memref<9x4x16xf32, #tpu.memory_space<vmem>>, vector<1x4x16xf32>
    %54 = vector.shape_cast %53 : vector<1x4x16xf32> to vector<4x16xf32>
    %cst_30 = arith.constant dense<0.000000e+00> : vector<256x16xf32>
    %55 = tpu.matmul %52, %54, %cst_30 {dimension_numbers = #tpu.dot_dimension_numbers<[1], [0], [0], [1], [0, 0, 1, 1], [], []>} : vector<256x4xf32>, vector<4x16xf32>, vector<256x16xf32> -> vector<256x16xf32>
    %56 = arith.addf %50, %55 : vector<256x16xf32>
    %c0_31 = arith.constant 0 : index
    %c0_32 = arith.constant 0 : index
    %57 = vector.load %arg3[%c0_31, %c0_32] : memref<1x16xf32, #tpu.memory_space<vmem>>, vector<1x16xf32>
    %58 = vector.broadcast %57 : vector<1x16xf32> to vector<256x16xf32>
    %59 = arith.addf %56, %58 : vector<256x16xf32>
    %cst_33 = arith.constant 0.000000e+00 : f32
    %60 = vector.broadcast %cst_33 : f32 to vector<256x16xf32>
    %61 = arith.maximumf %59, %60 : vector<256x16xf32>
    %c0_34 = arith.constant 0 : index
    %c0_35 = arith.constant 0 : index
    %c0_36 = arith.constant 0 : index
    %62 = vector.load %arg4[%c0_34, %c0_35, %c0_36] : memref<1x256x16xf32, #tpu.memory_space<vmem>>, vector<1x256x16xf32>
    %63 = vector.shape_cast %62 : vector<1x256x16xf32> to vector<256x16xf32>
    %64 = vector.shape_cast %61 : vector<256x16xf32> to vector<1x256x16xf32>
    tpu.vector_store %arg4[%c0_34, %c0_35, %c0_36], %64 {strides = array<i32>} : memref<1x256x16xf32, #tpu.memory_space<vmem>>, vector<1x256x16xf32>,
    return
  }
  func.func @transform_0(%arg0: i32) -> (i32, i32, i32, i32) {
    %c0_i32 = arith.constant 0 : i32
    %c0_i32_0 = arith.constant 0 : i32
    %c0_i32_1 = arith.constant 0 : i32
    %c0_i32_2 = arith.constant 0 : i32
    return %arg0, %c0_i32, %c0_i32_0, %c0_i32_1 : i32, i32, i32, i32
  }
  func.func @transform_1(%arg0: i32) -> (i32, i32, i32) {
    %c0_i32 = arith.constant 0 : i32
    %c0_i32_0 = arith.constant 0 : i32
    %c0_i32_1 = arith.constant 0 : i32
    %c0_i32_2 = arith.constant 0 : i32
    return %c0_i32, %c0_i32_0, %c0_i32_1 : i32, i32, i32
  }
  func.func @transform_2(%arg0: i32) -> (i32, i32) {
    %c0_i32 = arith.constant 0 : i32
    %c0_i32_0 = arith.constant 0 : i32
    %c0_i32_1 = arith.constant 0 : i32
    return %c0_i32, %c0_i32_0 : i32, i32
  }
  func.func @transform_3(%arg0: i32) -> (i32, i32, i32) {
    %c0_i32 = arith.constant 0 : i32
    %c0_i32_0 = arith.constant 0 : i32
    %c0_i32_1 = arith.constant 0 : i32
    return %arg0, %c0_i32, %c0_i32_0 : i32, i32, i32
  }
}

</mosaic_0001>

<llo_original>
// kernel: tpu_custom_call.1
$region0: #{tpu_custom_call.1}
  #allocation0 [shape = 'u32[]', space=smem, size = 0x4, offset = 0x4, fixed_abs, tag = 'smem constant byte address 0x4 - core index']
  #allocation1 [shape = 'u32[72,128]{1,0:T(1,128)}', space=vmem, size = 0x9000, scoped, tag = 'internal scratch']
  %s0 = inlined_call_operand.vmem [shape: f32[2,18,18,4], index: 0, kind: input, shape index: {}]
  %s1 = inlined_call_operand.vmem [shape: f32[9,4,16], index: 1, kind: input, shape index: {}]
  %s2 = inlined_call_operand.vmem [shape: f32[1,16], index: 2, kind: input, shape index: {}]
  %s3 = inlined_call_operand.vmem [shape: f32[2,256,16], index: 3, kind: output, shape index: {}]
  %s4 = sld [smem:[#allocation0]]
  $region45: #{tpu_custom_call.1} parent=0
    _
  %s6 = ssub.s32 1, %s4
  %s7 = scalar_select 0, %s6, %s4
  loop: start=0, step=1, limit=4
  $region2: #{tpu_custom_call.1} parent=0 // loop_pre_header
    _
  $region3: #{tpu_custom_call.1} parent=0 // loop_header
    %s9 = sphi 0, %s13
    %p10 = scmp.ge.s32.totalorder %s9, 4
    %s19 = sphi 0, %s21
    %s22 = sphi 0, %s19
    %s23 = sphi 0, %s22
    %s39 = sphi 0, %s23
    %s43 = sphi 0, %s43
    %s45 = sphi 0, %s43
    %s46 = sphi 0, %s45
    %s60 = sphi 0, %s46
    %s64 = sphi 0, %s64
    %s66 = sphi 0, %s64
    %s67 = sphi 0, %s66
    %s81 = sphi 0, %s67
    %s87 = sphi 0, %s89
    %s90 = sphi 0, %s87
    %s91 = sphi 0, %s90
    %s107 = sphi 0, %s91
  $region4: #{tpu_custom_call.1} parent=0 // loop_header_branch
    %12 = sbr.rel (%p10) target = $region8
  $region5: #{tpu_custom_call.1} parent=0 // loop_body
    %s14 = ssub.s32 %s9, 1
    %s15 = ssub.s32 %s9, 2
    %s16 = sadd.s32 %s9, 1
    %s17 = ssub.s32 %s9, %s16
    %p18 = scmp.eq.s32.totalorder %s17, 0
    %s20 = sadd.s32 %s19, 1
    %s21 = scalar_select %p18, %s19, %s20
    %p24 = pneg %p18
    %p25 = scmp.eq.s32.totalorder %s9, 1
    %p26 = por %p24, %p25
    %p27 = scmp.ne.s32.totalorder %s19, %s22
    %p28 = scmp.eq.s32.totalorder %s9, 0
    %p29 = por %p27, %p28
    %p30 = scmp.ne.s32.totalorder %s19, %s22
    %p31 = scmp.eq.s32.totalorder %s14, 1
    %p32 = por %p30, %p31
    %p33 = scmp.ne.s32.totalorder %s22, %s23
    %p34 = scmp.eq.s32.totalorder %s14, 0
    %p35 = por %p33, %p34
    %p36 = scmp.ne.s32.totalorder %s22, %s23
    %p37 = scmp.eq.s32.totalorder %s15, 1
    %p38 = por %p36, %p37
    %p40 = scmp.ne.s32.totalorder %s23, %s39
    %p41 = scmp.eq.s32.totalorder %s15, 0
    %p42 = por %p40, %p41
    %s44 = sadd.s32 %s43, 1
    %p47 = scmp.eq.s32.totalorder %s9, 1
    %p48 = scmp.ne.s32.totalorder %s43, %s45
    %p49 = scmp.eq.s32.totalorder %s9, 0
    %p50 = por %p48, %p49
    %p51 = scmp.ne.s32.totalorder %s43, %s45
    %p52 = scmp.eq.s32.totalorder %s14, 1
    %p53 = por %p51, %p52
    %p54 = scmp.ne.s32.totalorder %s45, %s46
    %p55 = scmp.eq.s32.totalorder %s14, 0
    %p56 = por %p54, %p55
    %p57 = scmp.ne.s32.totalorder %s45, %s46
    %p58 = scmp.eq.s32.totalorder %s15, 1
    %p59 = por %p57, %p58
    %p61 = scmp.ne.s32.totalorder %s46, %s60
    %p62 = scmp.eq.s32.totalorder %s15, 0
    %p63 = por %p61, %p62
    %s65 = sadd.s32 %s64, 1
    %p68 = scmp.eq.s32.totalorder %s9, 1
    %p69 = scmp.ne.s32.totalorder %s64, %s66
    %p70 = scmp.eq.s32.totalorder %s9, 0
    %p71 = por %p69, %p70
    %p72 = scmp.ne.s32.totalorder %s64, %s66
    %p73 = scmp.eq.s32.totalorder %s14, 1
    %p74 = por %p72, %p73
    %p75 = scmp.ne.s32.totalorder %s66, %s67
    %p76 = scmp.eq.s32.totalorder %s14, 0
    %p77 = por %p75, %p76
    %p78 = scmp.ne.s32.totalorder %s66, %s67
    %p79 = scmp.eq.s32.totalorder %s15, 1
    %p80 = por %p78, %p79
    %p82 = scmp.ne.s32.totalorder %s67, %s81
    %p83 = scmp.eq.s32.totalorder %s15, 0
    %p84 = por %p82, %p83
    %s85 = ssub.s32 %s9, %s16
    %p86 = scmp.eq.s32.totalorder %s85, 0
    %s88 = sadd.s32 %s87, 1
    %s89 = scalar_select %p86, %s87, %s88
    %p92 = pneg %p86
    %p93 = scmp.eq.s32.totalorder %s9, 1
    %p94 = por %p92, %p93
    %p95 = scmp.ne.s32.totalorder %s87, %s90
    %p96 = scmp.eq.s32.totalorder %s9, 0
    %p97 = por %p95, %p96
    %p98 = scmp.ne.s32.totalorder %s87, %s90
    %p99 = scmp.eq.s32.totalorder %s14, 1
    %p100 = por %p98, %p99
    %p101 = scmp.ne.s32.totalorder %s90, %s91
    %p102 = scmp.eq.s32.totalorder %s14, 0
    %p103 = por %p101, %p102
    %p104 = scmp.ne.s32.totalorder %s90, %s91
    %p105 = scmp.eq.s32.totalorder %s15, 1
    %p106 = por %p104, %p105
    %p108 = scmp.ne.s32.totalorder %s91, %s107
    %p109 = scmp.eq.s32.totalorder %s15, 0
    %p110 = por %p108, %p109
    %p111 = scmp.le.s32.totalorder 1, %s9
    %p112 = scmp.lt.s32.totalorder %s9, 3
    %p113 = pnand %p111, %p112
    %p114 = pneg %p113
    // Predicated region
    $region9: #{tpu_custom_call.1} parent=5 // pred_check
      _
    $region10: #{tpu_custom_call.1} parent=5 // pred_check_branch
      %116 = sbr.rel (%p113) target = $region12
    $region11: #{tpu_custom_call.1} parent=5 // pred_region
      %s117 = ssub.s32 %s9, 1
      // Predicated region
      $region13: #{tpu_custom_call.1} parent=11 // pred_check
        %p118 = pneg %p56
      $region14: #{tpu_custom_call.1} parent=11 // pred_check_branch
        %120 = sbr.rel (%p118) target = $region16
      $region15: #{tpu_custom_call.1} parent=11 // pred_region
        _
      $region16: #{tpu_custom_call.1} parent=11 // pred_fallthru
        _
      // Predicated region
      $region17: #{tpu_custom_call.1} parent=11 // pred_check
        %p121 = pneg %p77
      $region18: #{tpu_custom_call.1} parent=11 // pred_check_branch
        %123 = sbr.rel (%p121) target = $region20
      $region19: #{tpu_custom_call.1} parent=11 // pred_region
        _
      $region20: #{tpu_custom_call.1} parent=11 // pred_fallthru
        _
    $region12: #{tpu_custom_call.1} parent=5 // pred_fallthru
      _
    %p124 = scmp.lt.s32.totalorder %s9, 2
    // Predicated region
    $region21: #{tpu_custom_call.1} parent=5 // pred_check
      %p125 = pneg %p124
    $region22: #{tpu_custom_call.1} parent=5 // pred_check_branch
      %127 = sbr.rel (%p125) target = $region24
    $region23: #{tpu_custom_call.1} parent=5 // pred_region
      // Predicated region
      $region25: #{tpu_custom_call.1} parent=23 // pred_check
        %p128 = pneg %p29
      $region26: #{tpu_custom_call.1} parent=23 // pred_check_branch
        %130 = sbr.rel (%p128) target = $region28
      $region27: #{tpu_custom_call.1} parent=23 // pred_region
        %p131 = scmp.lt.s32.totalorder %s9, 1
        %s132 = scalar_select %p131, %s9, 1
        %s133 = smul.addr %s132, 54
        %s134 = smul.addr %s133, 8
        %s135 = scalar_lea.vmem %s0, %s134
      $region28: #{tpu_custom_call.1} parent=23 // pred_fallthru
        _
    $region24: #{tpu_custom_call.1} parent=5 // pred_fallthru
      _
    %p136 = scmp.le.s32.totalorder 1, %s9
    %p137 = scmp.lt.s32.totalorder %s9, 3
    %p138 = pnand %p136, %p137
    %p139 = pneg %p138
    // Predicated region
    $region29: #{tpu_custom_call.1} parent=5 // pred_check
      _
    $region30: #{tpu_custom_call.1} parent=5 // pred_check_branch
      %141 = sbr.rel (%p138) target = $region32
    $region31: #{tpu_custom_call.1} parent=5 // pred_region
      %s142 = ssub.s32 %s9, 1
      %p143 = scmp.lt.s32.totalorder %s14, 1
      %s144 = scalar_select %p143, %s14, 1
      %s145 = smul.addr %s144, 54
      %s146 = smul.addr %s145, 8
      %s147 = scalar_lea.vmem %s0, %s146
      %p148 = pneg %p35
      %p149 = pneg %p32
      %p150 = pneg %p56
      %p151 = pneg %p53
      %p152 = pneg %p77
      %p153 = pneg %p74
      %p154 = pneg %p103
      %p155 = pneg %p100
      %p156 = scmp.lt.s32.totalorder %s14, 1
      %s157 = scalar_select %p156, %s14, 1
      %s158 = smul.addr %s157, 32
      %s159 = smul.addr %s158, 8
      %s160 = scalar_lea.vmem %s3, %s159
      %p161 = scmp.lt.s32.totalorder %s14, 1
      %s162 = scalar_select %p161, %s14, 1
      %s163 = smul.addr %s162, 54
      %s164 = smul.addr %s163, 8
      %s165 = scalar_lea.vmem %s0, %s164
      %p166 = scmp.lt.s32.totalorder %s14, 1
      %s167 = scalar_select %p166, %s14, 1
      %s168 = smul.addr %s167, 32
      %s169 = smul.addr %s168, 8
      %s170 = scalar_lea.vmem %s3, %s169
      %v171 = vld [vmem:[%s165] sm:$0xff]
      %v172 = vld [vmem:[%s165 + $0x8] sm:$0xff]
      %v173 = vld [vmem:[%s165 + $0x10] sm:$0x3]
      %v174 = vld [vmem:[%s165 + $0x18] sm:$0xff]
      %v175 = vld [vmem:[%s165 + $0x20] sm:$0xff]
      %v176 = vld [vmem:[%s165 + $0x28] sm:$0x3]
      %v177 = vld [vmem:[%s165 + $0x30] sm:$0xff]
      %v178 = vld [vmem:[%s165 + $0x38] sm:$0xff]
      %v179 = vld [vmem:[%s165 + $0x40] sm:$0x3]
      %v180 = vld [vmem:[%s165 + $0x48] sm:$0xff]
      %v181 = vld [vmem:[%s165 + $0x50] sm:$0xff]
      %v182 = vld [vmem:[%s165 + $0x58] sm:$0x3]
      %v183 = vld [vmem:[%s165 + $0x60] sm:$0xff]
      %v184 = vld [vmem:[%s165 + $0x68] sm:$0xff]
      %v185 = vld [vmem:[%s165 + $0x70] sm:$0x3]
      %v186 = vld [vmem:[%s165 + $0x78] sm:$0xff]
      %v187 = vld [vmem:[%s165 + $0x80] sm:$0xff]
      %v188 = vld [vmem:[%s165 + $0x88] sm:$0x3]
      %v189 = vld [vmem:[%s165 + $0x90] sm:$0xff]
      %v190 = vld [vmem:[%s165 + $0x98] sm:$0xff]
      %v191 = vld [vmem:[%s165 + $0xa0] sm:$0x3]
      %v192 = vld [vmem:[%s165 + $0xa8] sm:$0xff]
      %v193 = vld [vmem:[%s165 + $0xb0] sm:$0xff]
      %v194 = vld [vmem:[%s165 + $0xb8] sm:$0x3]
      %v195 = vld [vmem:[%s165 + $0xc0] sm:$0xff]
      %v196 = vld [vmem:[%s165 + $0xc8] sm:$0xff]
      %v197 = vld [vmem:[%s165 + $0xd0] sm:$0x3]
      %v198 = vld [vmem:[%s165 + $0xd8] sm:$0xff]
      %v199 = vld [vmem:[%s165 + $0xe0] sm:$0xff]
      %v200 = vld [vmem:[%s165 + $0xe8] sm:$0x3]
      %v201 = vld [vmem:[%s165 + $0xf0] sm:$0xff]
      %v202 = vld [vmem:[%s165 + $0xf8] sm:$0xff]
      %v203 = vld [vmem:[%s165 + $0x100] sm:$0x3]
      %v204 = vld [vmem:[%s165 + $0x108] sm:$0xff]
      %v205 = vld [vmem:[%s165 + $0x110] sm:$0xff]
      %v206 = vld [vmem:[%s165 + $0x118] sm:$0x3]
      %v207 = vld [vmem:[%s165 + $0x120] sm:$0xff]
      %v208 = vld [vmem:[%s165 + $0x128] sm:$0xff]
      %v209 = vld [vmem:[%s165 + $0x130] sm:$0x3]
      %v210 = vld [vmem:[%s165 + $0x138] sm:$0xff]
      %v211 = vld [vmem:[%s165 + $0x140] sm:$0xff]
      %v212 = vld [vmem:[%s165 + $0x148] sm:$0x3]
      %v213 = vld [vmem:[%s165 + $0x150] sm:$0xff]
      %v214 = vld [vmem:[%s165 + $0x158] sm:$0xff]
      %v215 = vld [vmem:[%s165 + $0x160] sm:$0x3]
      %v216 = vld [vmem:[%s165 + $0x168] sm:$0xff]
      %v217 = vld [vmem:[%s165 + $0x170] sm:$0xff]
      %v218 = vld [vmem:[%s165 + $0x178] sm:$0x3]
      %v219 = vld [vmem:[%s165 + $0x180] sm:$0xff]
      %v220 = vld [vmem:[%s165 + $0x188] sm:$0xff]
      %v221 = vld [vmem:[%s165 + $0x190] sm:$0x3]
      %v222 = vld [vmem:[%s165 + $0x198] sm:$0xff]
      %v223 = vld [vmem:[%s165 + $0x1a0] sm:$0xff]
      %v224 = vld [vmem:[%s165 + $0x1a8] sm:$0x3]
      %v225 = vld [vmem:[%s1] sm:$0xf]
      %vm274 = vcmask 1046528
      %v275 = vrot.slane %v171, 1
      %v276 = vrot.slane %v172, 1
      %v277 = vsel %vm274, %v275, %v276
      %v278 = vrot.slane %v173, 1
      %v279 = vsel %vm274, %v276, %v278
      %v280 = vrot.slane %v174, 1
      %v281 = vrot.slane %v175, 1
      %v282 = vsel %vm274, %v280, %v281
      %v283 = vrot.slane %v176, 1
      %v284 = vsel %vm274, %v281, %v283
      %v285 = vrot.slane %v177, 1
      %v286 = vrot.slane %v178, 1
      %v287 = vsel %vm274, %v285, %v286
      %v288 = vrot.slane %v179, 1
      %v289 = vsel %vm274, %v286, %v288
      %v290 = vrot.slane %v180, 1
      %v291 = vrot.slane %v181, 1
      %v292 = vsel %vm274, %v290, %v291
      %v293 = vrot.slane %v182, 1
      %v294 = vsel %vm274, %v291, %v293
      %v295 = vrot.slane %v183, 1
      %v296 = vrot.slane %v184, 1
      %v297 = vsel %vm274, %v295, %v296
      %v298 = vrot.slane %v185, 1
      %v299 = vsel %vm274, %v296, %v298
      %v300 = vrot.slane %v186, 1
      %v301 = vrot.slane %v187, 1
      %v302 = vsel %vm274, %v300, %v301
      %v303 = vrot.slane %v188, 1
      %v304 = vsel %vm274, %v301, %v303
      %v305 = vrot.slane %v189, 1
      %v306 = vrot.slane %v190, 1
      %v307 = vsel %vm274, %v305, %v306
      %v308 = vrot.slane %v191, 1
      %v309 = vsel %vm274, %v306, %v308
      %v310 = vrot.slane %v192, 1
      %v311 = vrot.slane %v193, 1
      %v312 = vsel %vm274, %v310, %v311
      %v313 = vrot.slane %v194, 1
      %v314 = vsel %vm274, %v311, %v313
      %v315 = vrot.slane %v195, 1
      %v316 = vrot.slane %v196, 1
      %v317 = vsel %vm274, %v315, %v316
      %v318 = vrot.slane %v197, 1
      %v319 = vsel %vm274, %v316, %v318
      %v320 = vrot.slane %v198, 1
      %v321 = vrot.slane %v199, 1
      %v322 = vsel %vm274, %v320, %v321
      %v323 = vrot.slane %v200, 1
      %v324 = vsel %vm274, %v321, %v323
      %v325 = vrot.slane %v201, 1
      %v326 = vrot.slane %v202, 1
      %v327 = vsel %vm274, %v325, %v326
      %v328 = vrot.slane %v203, 1
      %v329 = vsel %vm274, %v326, %v328
      %v330 = vrot.slane %v204, 1
      %v331 = vrot.slane %v205, 1
      %v332 = vsel %vm274, %v330, %v331
      %v333 = vrot.slane %v206, 1
      %v334 = vsel %vm274, %v331, %v333
      %v335 = vrot.slane %v207, 1
      %v336 = vrot.slane %v208, 1
      %v337 = vsel %vm274, %v335, %v336
      %v338 = vrot.slane %v209, 1
      %v339 = vsel %vm274, %v336, %v338
      %v340 = vrot.slane %v210, 1
      %v341 = vrot.slane %v211, 1
      %v342 = vsel %vm274, %v340, %v341
      %v343 = vrot.slane %v212, 1
      %v344 = vsel %vm274, %v341, %v343
      %v345 = vrot.slane %v213, 1
      %v346 = vrot.slane %v214, 1
      %v347 = vsel %vm274, %v345, %v346
      %v348 = vrot.slane %v215, 1
      %v349 = vsel %vm274, %v346, %v348
      %v350 = vrot.slane %v216, 1
      %v351 = vrot.slane %v217, 1
      %v352 = vsel %vm274, %v350, %v351
      %v353 = vrot.slane %v218, 1
      %v354 = vsel %vm274, %v351, %v353
      %s355 = scalar_lea.vmem %s1, 4
      %v356 = vld [vmem:[%s355] sm:$0xf]
      %vm357 = vcmask 31744
      %v358 = vsel %vm357, %v277, 0
      %v360 = vsel %vm357, %v279, 0
      %v362 = vsel %vm357, %v282, 0
      %v364 = vsel %vm357, %v284, 0
      %v366 = vsel %vm357, %v287, 0
      %v368 = vsel %vm357, %v289, 0
      %v370 = vsel %vm357, %v292, 0
      %v372 = vsel %vm357, %v294, 0
      %v374 = vsel %vm357, %v297, 0
      %v376 = vsel %vm357, %v299, 0
      %v378 = vsel %vm357, %v302, 0
      %v380 = vsel %vm357, %v304, 0
      %v382 = vsel %vm357, %v307, 0
      %v384 = vsel %vm357, %v309, 0
      %v386 = vsel %vm357, %v312, 0
      %v388 = vsel %vm357, %v314, 0
      %v390 = vsel %vm357, %v317, 0
      %v392 = vsel %vm357, %v319, 0
      %v394 = vsel %vm357, %v322, 0
      %v396 = vsel %vm357, %v324, 0
      %v398 = vsel %vm357, %v327, 0
      %v400 = vsel %vm357, %v329, 0
      %v402 = vsel %vm357, %v332, 0
      %v404 = vsel %vm357, %v334, 0
      %v406 = vsel %vm357, %v337, 0
      %v408 = vsel %vm357, %v339, 0
      %v410 = vsel %vm357, %v342, 0
      %v412 = vsel %vm357, %v344, 0
      %v414 = vsel %vm357, %v347, 0
      %v416 = vsel %vm357, %v349, 0
      %v418 = vsel %vm357, %v352, 0
      %v420 = vsel %vm357, %v354, 0
      %vm422 = vcmask 1043456
      %v424 = vsel %vm422, %v356, 0
      %426 = vmatpush.msra.mxu0 0.0
      %427 = vmatpush.msra.mxu0 0.0
      %428 = vmatpush.msra.mxu0 0.0
      %429 = vmatpush.msra.mxu0 0.0
      %430 = vmatpush.msra.mxu0 0.0
      %431 = vmatpush.msra.mxu0 0.0
      %432 = vmatpush.msra.mxu0 0.0
      %433 = vmatpush.msra.mxu0 0.0
      %434 = vmatpush.msra.mxu0 0.0
      %435 = vmatpush.msra.mxu0 0.0
      %436 = vmatpush.msra.mxu0 0.0
      %437 = vmatpush.msra.mxu0 0.0
      %438 = vmatpush.msra.mxu0 0.0
      %439 = vmatpush.msra.mxu0 0.0
      %440 = vmatpush.msra.mxu0 0.0
      %441 = vmatpush.msra.mxu0 %v424
      %442 = vmatmul.f32.gmra.mxu0 %v358
      %v443 = vpop.f32.mrf.mxu0
      %v444 = vadd.f32 0.0, %v443
      %445 = vmatmul.f32.gmra.mxu0 %v360
      %v446 = vpop.f32.mrf.mxu0
      %v447 = vadd.f32 0.0, %v446
      %448 = vmatmul.f32.gmra.mxu0 %v362
      %v449 = vpop.f32.mrf.mxu0
      %v450 = vadd.f32 0.0, %v449
      %451 = vmatmul.f32.gmra.mxu0 %v364
      %v452 = vpop.f32.mrf.mxu0
      %v453 = vadd.f32 0.0, %v452
      %454 = vmatmul.f32.gmra.mxu0 %v366
      %v455 = vpop.f32.mrf.mxu0
      %v456 = vadd.f32 0.0, %v455
      %457 = vmatmul.f32.gmra.mxu0 %v368
      %v458 = vpop.f32.mrf.mxu0
      %v459 = vadd.f32 0.0, %v458
      %460 = vmatmul.f32.gmra.mxu0 %v370
      %v461 = vpop.f32.mrf.mxu0
      %v462 = vadd.f32 0.0, %v461
      %463 = vmatmul.f32.gmra.mxu0 %v372
      %v464 = vpop.f32.mrf.mxu0
      %v465 = vadd.f32 0.0, %v464
      %466 = vmatmul.f32.gmra.mxu0 %v374
      %v467 = vpop.f32.mrf.mxu0
      %v468 = vadd.f32 0.0, %v467
      %469 = vmatmul.f32.gmra.mxu0 %v376
      %v470 = vpop.f32.mrf.mxu0
      %v471 = vadd.f32 0.0, %v470
      %472 = vmatmul.f32.gmra.mxu0 %v378
      %v473 = vpop.f32.mrf.mxu0
      %v474 = vadd.f32 0.0, %v473
      %475 = vmatmul.f32.gmra.mxu0 %v380
      %v476 = vpop.f32.mrf.mxu0
      %v477 = vadd.f32 0.0, %v476
      %478 = vmatmul.f32.gmra.mxu0 %v382
      %v479 = vpop.f32.mrf.mxu0
      %v480 = vadd.f32 0.0, %v479
      %481 = vmatmul.f32.gmra.mxu0 %v384
      %v482 = vpop.f32.mrf.mxu0
      %v483 = vadd.f32 0.0, %v482
      %484 = vmatmul.f32.gmra.mxu0 %v386
      %v485 = vpop.f32.mrf.mxu0
      %v486 = vadd.f32 0.0, %v485
      %487 = vmatmul.f32.gmra.mxu0 %v388
      %v488 = vpop.f32.mrf.mxu0
      %v489 = vadd.f32 0.0, %v488
      %490 = vmatmul.f32.gmra.mxu0 %v390
      %v491 = vpop.f32.mrf.mxu0
      %v492 = vadd.f32 0.0, %v491
      %493 = vmatmul.f32.gmra.mxu0 %v392
      %v494 = vpop.f32.mrf.mxu0
      %v495 = vadd.f32 0.0, %v494
      %496 = vmatmul.f32.gmra.mxu0 %v394
      %v497 = vpop.f32.mrf.mxu0
      %v498 = vadd.f32 0.0, %v497
      %499 = vmatmul.f32.gmra.mxu0 %v396
      %v500 = vpop.f32.mrf.mxu0
      %v501 = vadd.f32 0.0, %v500
      %502 = vmatmul.f32.gmra.mxu0 %v398
      %v503 = vpop.f32.mrf.mxu0
      %v504 = vadd.f32 0.0, %v503
      %505 = vmatmul.f32.gmra.mxu0 %v400
      %v506 = vpop.f32.mrf.mxu0
      %v507 = vadd.f32 0.0, %v506
      %508 = vmatmul.f32.gmra.mxu0 %v402
      %v509 = vpop.f32.mrf.mxu0
      %v510 = vadd.f32 0.0, %v509
      %511 = vmatmul.f32.gmra.mxu0 %v404
      %v512 = vpop.f32.mrf.mxu0
      %v513 = vadd.f32 0.0, %v512
      %514 = vmatmul.f32.gmra.mxu0 %v406
      %v515 = vpop.f32.mrf.mxu0
      %v516 = vadd.f32 0.0, %v515
      %517 = vmatmul.f32.gmra.mxu0 %v408
      %v518 = vpop.f32.mrf.mxu0
      %v519 = vadd.f32 0.0, %v518
      %520 = vmatmul.f32.gmra.mxu0 %v410
      %v521 = vpop.f32.mrf.mxu0
      %v522 = vadd.f32 0.0, %v521
      %523 = vmatmul.f32.gmra.mxu0 %v412
      %v524 = vpop.f32.mrf.mxu0
      %v525 = vadd.f32 0.0, %v524
      %526 = vmatmul.f32.gmra.mxu0 %v414
      %v527 = vpop.f32.mrf.mxu0
      %v528 = vadd.f32 0.0, %v527
      %529 = vmatmul.f32.gmra.mxu0 %v416
      %v530 = vpop.f32.mrf.mxu0
      %v531 = vadd.f32 0.0, %v530
      %532 = vmatmul.f32.gmra.mxu0 %v418
      %v533 = vpop.f32.mrf.mxu0
      %v534 = vadd.f32 0.0, %v533
      %535 = vmatmul.f32.gmra.mxu0 %v420
      %v536 = vpop.f32.mrf.mxu0
      %v537 = vadd.f32 0.0, %v536
      %538 = vdwg.mxu0
      %v539 = vsel %vm357, %v171, 0
      %v541 = vsel %vm357, %v172, 0
      %v543 = vsel %vm357, %v174, 0
      %v545 = vsel %vm357, %v175, 0
      %v547 = vsel %vm357, %v177, 0
      %v549 = vsel %vm357, %v178, 0
      %v551 = vsel %vm357, %v180, 0
      %v553 = vsel %vm357, %v181, 0
      %v555 = vsel %vm357, %v183, 0
      %v557 = vsel %vm357, %v184, 0
      %v559 = vsel %vm357, %v186, 0
      %v561 = vsel %vm357, %v187, 0
      %v563 = vsel %vm357, %v189, 0
      %v565 = vsel %vm357, %v190, 0
      %v567 = vsel %vm357, %v192, 0
      %v569 = vsel %vm357, %v193, 0
      %v571 = vsel %vm357, %v195, 0
      %v573 = vsel %vm357, %v196, 0
      %v575 = vsel %vm357, %v198, 0
      %v577 = vsel %vm357, %v199, 0
      %v579 = vsel %vm357, %v201, 0
      %v581 = vsel %vm357, %v202, 0
      %v583 = vsel %vm357, %v204, 0
      %v585 = vsel %vm357, %v205, 0
      %v587 = vsel %vm357, %v207, 0
      %v589 = vsel %vm357, %v208, 0
      %v591 = vsel %vm357, %v210, 0
      %v593 = vsel %vm357, %v211, 0
      %v595 = vsel %vm357, %v213, 0
      %v597 = vsel %vm357, %v214, 0
      %v599 = vsel %vm357, %v216, 0
      %v601 = vsel %vm357, %v217, 0
      %v604 = vsel %vm422, %v225, 0
      %606 = vmatpush.msra.mxu0 0.0
      %607 = vmatpush.msra.mxu0 0.0
      %608 = vmatpush.msra.mxu0 0.0
      %609 = vmatpush.msra.mxu0 0.0
      %610 = vmatpush.msra.mxu0 0.0
      %611 = vmatpush.msra.mxu0 0.0
      %612 = vmatpush.msra.mxu0 0.0
      %613 = vmatpush.msra.mxu0 0.0
      %614 = vmatpush.msra.mxu0 0.0
      %615 = vmatpush.msra.mxu0 0.0
      %616 = vmatpush.msra.mxu0 0.0
      %617 = vmatpush.msra.mxu0 0.0
      %618 = vmatpush.msra.mxu0 0.0
      %619 = vmatpush.msra.mxu0 0.0
      %620 = vmatpush.msra.mxu0 0.0
      %621 = vmatpush.msra.mxu0 %v604
      %622 = vmatmul.f32.gmra.mxu0 %v539
      %v623 = vpop.f32.mrf.mxu0
      %v624 = vadd.f32 %v444, %v623
      %625 = vmatmul.f32.gmra.mxu0 %v541
      %v626 = vpop.f32.mrf.mxu0
      %v627 = vadd.f32 %v447, %v626
      %628 = vmatmul.f32.gmra.mxu0 %v543
      %v629 = vpop.f32.mrf.mxu0
      %v630 = vadd.f32 %v450, %v629
      %631 = vmatmul.f32.gmra.mxu0 %v545
      %v632 = vpop.f32.mrf.mxu0
      %v633 = vadd.f32 %v453, %v632
      %634 = vmatmul.f32.gmra.mxu0 %v547
      %v635 = vpop.f32.mrf.mxu0
      %v636 = vadd.f32 %v456, %v635
      %637 = vmatmul.f32.gmra.mxu0 %v549
      %v638 = vpop.f32.mrf.mxu0
      %v639 = vadd.f32 %v459, %v638
      %640 = vmatmul.f32.gmra.mxu0 %v551
      %v641 = vpop.f32.mrf.mxu0
      %v642 = vadd.f32 %v462, %v641
      %643 = vmatmul.f32.gmra.mxu0 %v553
      %v644 = vpop.f32.mrf.mxu0
      %v645 = vadd.f32 %v465, %v644
      %646 = vmatmul.f32.gmra.mxu0 %v555
      %v647 = vpop.f32.mrf.mxu0
      %v648 = vadd.f32 %v468, %v647
      %649 = vmatmul.f32.gmra.mxu0 %v557
      %v650 = vpop.f32.mrf.mxu0
      %v651 = vadd.f32 %v471, %v650
      %652 = vmatmul.f32.gmra.mxu0 %v559
      %v653 = vpop.f32.mrf.mxu0
      %v654 = vadd.f32 %v474, %v653
      %655 = vmatmul.f32.gmra.mxu0 %v561
      %v656 = vpop.f32.mrf.mxu0
      %v657 = vadd.f32 %v477, %v656
      %658 = vmatmul.f32.gmra.mxu0 %v563
      %v659 = vpop.f32.mrf.mxu0
      %v660 = vadd.f32 %v480, %v659
      %661 = vmatmul.f32.gmra.mxu0 %v565
      %v662 = vpop.f32.mrf.mxu0
      %v663 = vadd.f32 %v483, %v662
      %664 = vmatmul.f32.gmra.mxu0 %v567
      %v665 = vpop.f32.mrf.mxu0
      %v666 = vadd.f32 %v486, %v665
      %667 = vmatmul.f32.gmra.mxu0 %v569
      %v668 = vpop.f32.mrf.mxu0
      %v669 = vadd.f32 %v489, %v668
      %670 = vmatmul.f32.gmra.mxu0 %v571
      %v671 = vpop.f32.mrf.mxu0
      %v672 = vadd.f32 %v492, %v671
      %673 = vmatmul.f32.gmra.mxu0 %v573
      %v674 = vpop.f32.mrf.mxu0
      %v675 = vadd.f32 %v495, %v674
      %676 = vmatmul.f32.gmra.mxu0 %v575
      %v677 = vpop.f32.mrf.mxu0
      %v678 = vadd.f32 %v498, %v677
      %679 = vmatmul.f32.gmra.mxu0 %v577
      %v680 = vpop.f32.mrf.mxu0
      %v681 = vadd.f32 %v501, %v680
      %682 = vmatmul.f32.gmra.mxu0 %v579
      %v683 = vpop.f32.mrf.mxu0
      %v684 = vadd.f32 %v504, %v683
      %685 = vmatmul.f32.gmra.mxu0 %v581
      %v686 = vpop.f32.mrf.mxu0
      %v687 = vadd.f32 %v507, %v686
      %688 = vmatmul.f32.gmra.mxu0 %v583
      %v689 = vpop.f32.mrf.mxu0
      %v690 = vadd.f32 %v510, %v689
      %691 = vmatmul.f32.gmra.mxu0 %v585
      %v692 = vpop.f32.mrf.mxu0
      %v693 = vadd.f32 %v513, %v692
      %694 = vmatmul.f32.gmra.mxu0 %v587
      %v695 = vpop.f32.mrf.mxu0
      %v696 = vadd.f32 %v516, %v695
      %697 = vmatmul.f32.gmra.mxu0 %v589
      %v698 = vpop.f32.mrf.mxu0
      %v699 = vadd.f32 %v519, %v698
      %700 = vmatmul.f32.gmra.mxu0 %v591
      %v701 = vpop.f32.mrf.mxu0
      %v702 = vadd.f32 %v522, %v701
      %703 = vmatmul.f32.gmra.mxu0 %v593
      %v704 = vpop.f32.mrf.mxu0
      %v705 = vadd.f32 %v525, %v704
      %706 = vmatmul.f32.gmra.mxu0 %v595
      %v707 = vpop.f32.mrf.mxu0
      %v708 = vadd.f32 %v528, %v707
      %709 = vmatmul.f32.gmra.mxu0 %v597
      %v710 = vpop.f32.mrf.mxu0
      %v711 = vadd.f32 %v531, %v710
      %712 = vmatmul.f32.gmra.mxu0 %v599
      %v713 = vpop.f32.mrf.mxu0
      %v714 = vadd.f32 %v534, %v713
      %715 = vmatmul.f32.gmra.mxu0 %v601
      %v716 = vpop.f32.mrf.mxu0
      %v717 = vadd.f32 %v537, %v716
      %718 = vdwg.mxu0
      %vm719 = vcmask 1045504
      %v720 = vrot.slane %v171, 2
      %v721 = vrot.slane %v172, 2
      %v722 = vsel %vm719, %v720, %v721
      %v723 = vrot.slane %v173, 2
      %v724 = vsel %vm719, %v721, %v723
      %v725 = vrot.slane %v174, 2
      %v726 = vrot.slane %v175, 2
      %v727 = vsel %vm719, %v725, %v726
      %v728 = vrot.slane %v176, 2
      %v729 = vsel %vm719, %v726, %v728
      %v730 = vrot.slane %v177, 2
      %v731 = vrot.slane %v178, 2
      %v732 = vsel %vm719, %v730, %v731
      %v733 = vrot.slane %v179, 2
      %v734 = vsel %vm719, %v731, %v733
      %v735 = vrot.slane %v180, 2
      %v736 = vrot.slane %v181, 2
      %v737 = vsel %vm719, %v735, %v736
      %v738 = vrot.slane %v182, 2
      %v739 = vsel %vm719, %v736, %v738
      %v740 = vrot.slane %v183, 2
      %v741 = vrot.slane %v184, 2
      %v742 = vsel %vm719, %v740, %v741
      %v743 = vrot.slane %v185, 2
      %v744 = vsel %vm719, %v741, %v743
      %v745 = vrot.slane %v186, 2
      %v746 = vrot.slane %v187, 2
      %v747 = vsel %vm719, %v745, %v746
      %v748 = vrot.slane %v188, 2
      %v749 = vsel %vm719, %v746, %v748
      %v750 = vrot.slane %v189, 2
      %v751 = vrot.slane %v190, 2
      %v752 = vsel %vm719, %v750, %v751
      %v753 = vrot.slane %v191, 2
      %v754 = vsel %vm719, %v751, %v753
      %v755 = vrot.slane %v192, 2
      %v756 = vrot.slane %v193, 2
      %v757 = vsel %vm719, %v755, %v756
      %v758 = vrot.slane %v194, 2
      %v759 = vsel %vm719, %v756, %v758
      %v760 = vrot.slane %v195, 2
      %v761 = vrot.slane %v196, 2
      %v762 = vsel %vm719, %v760, %v761
      %v763 = vrot.slane %v197, 2
      %v764 = vsel %vm719, %v761, %v763
      %v765 = vrot.slane %v198, 2
      %v766 = vrot.slane %v199, 2
      %v767 = vsel %vm719, %v765, %v766
      %v768 = vrot.slane %v200, 2
      %v769 = vsel %vm719, %v766, %v768
      %v770 = vrot.slane %v201, 2
      %v771 = vrot.slane %v202, 2
      %v772 = vsel %vm719, %v770, %v771
      %v773 = vrot.slane %v203, 2
      %v774 = vsel %vm719, %v771, %v773
      %v775 = vrot.slane %v204, 2
      %v776 = vrot.slane %v205, 2
      %v777 = vsel %vm719, %v775, %v776
      %v778 = vrot.slane %v206, 2
      %v779 = vsel %vm719, %v776, %v778
      %v780 = vrot.slane %v207, 2
      %v781 = vrot.slane %v208, 2
      %v782 = vsel %vm719, %v780, %v781
      %v783 = vrot.slane %v209, 2
      %v784 = vsel %vm719, %v781, %v783
      %v785 = vrot.slane %v210, 2
      %v786 = vrot.slane %v211, 2
      %v787 = vsel %vm719, %v785, %v786
      %v788 = vrot.slane %v212, 2
      %v789 = vsel %vm719, %v786, %v788
      %v790 = vrot.slane %v213, 2
      %v791 = vrot.slane %v214, 2
      %v792 = vsel %vm719, %v790, %v791
      %v793 = vrot.slane %v215, 2
      %v794 = vsel %vm719, %v791, %v793
      %v795 = vrot.slane %v216, 2
      %v796 = vrot.slane %v217, 2
      %v797 = vsel %vm719, %v795, %v796
      %v798 = vrot.slane %v218, 2
      %v799 = vsel %vm719, %v796, %v798
      %s800 = scalar_lea.vmem %s1, 8
      %v801 = vld [vmem:[%s800] sm:$0xf]
      %v802 = vsel %vm357, %v722, 0
      %v804 = vsel %vm357, %v724, 0
      %v806 = vsel %vm357, %v727, 0
      %v808 = vsel %vm357, %v729, 0
      %v810 = vsel %vm357, %v732, 0
      %v812 = vsel %vm357, %v734, 0
      %v814 = vsel %vm357, %v737, 0
      %v816 = vsel %vm357, %v739, 0
      %v818 = vsel %vm357, %v742, 0
      %v820 = vsel %vm357, %v744, 0
      %v822 = vsel %vm357, %v747, 0
      %v824 = vsel %vm357, %v749, 0
      %v826 = vsel %vm357, %v752, 0
      %v828 = vsel %vm357, %v754, 0
      %v830 = vsel %vm357, %v757, 0
      %v832 = vsel %vm357, %v759, 0
      %v834 = vsel %vm357, %v762, 0
      %v836 = vsel %vm357, %v764, 0
      %v838 = vsel %vm357, %v767, 0
      %v840 = vsel %vm357, %v769, 0
      %v842 = vsel %vm357, %v772, 0
      %v844 = vsel %vm357, %v774, 0
      %v846 = vsel %vm357, %v777, 0
      %v848 = vsel %vm357, %v779, 0
      %v850 = vsel %vm357, %v782, 0
      %v852 = vsel %vm357, %v784, 0
      %v854 = vsel %vm357, %v787, 0
      %v856 = vsel %vm357, %v789, 0
      %v858 = vsel %vm357, %v792, 0
      %v860 = vsel %vm357, %v794, 0
      %v862 = vsel %vm357, %v797, 0
      %v864 = vsel %vm357, %v799, 0
      %v867 = vsel %vm422, %v801, 0
      %869 = vmatpush.msra.mxu0 0.0
      %870 = vmatpush.msra.mxu0 0.0
      %871 = vmatpush.msra.mxu0 0.0
      %872 = vmatpush.msra.mxu0 0.0
      %873 = vmatpush.msra.mxu0 0.0
      %874 = vmatpush.msra.mxu0 0.0
      %875 = vmatpush.msra.mxu0 0.0
      %876 = vmatpush.msra.mxu0 0.0
      %877 = vmatpush.msra.mxu0 0.0
      %878 = vmatpush.msra.mxu0 0.0
      %879 = vmatpush.msra.mxu0 0.0
      %880 = vmatpush.msra.mxu0 0.0
      %881 = vmatpush.msra.mxu0 0.0
      %882 = vmatpush.msra.mxu0 0.0
      %883 = vmatpush.msra.mxu0 0.0
      %884 = vmatpush.msra.mxu0 %v867
      %885 = vmatmul.f32.gmra.mxu0 %v802
      %v886 = vpop.f32.mrf.mxu0
      %v887 = vadd.f32 0.0, %v886
      %888 = vmatmul.f32.gmra.mxu0 %v804
      %v889 = vpop.f32.mrf.mxu0
      %v890 = vadd.f32 0.0, %v889
      %891 = vmatmul.f32.gmra.mxu0 %v806
      %v892 = vpop.f32.mrf.mxu0
      %v893 = vadd.f32 0.0, %v892
      %894 = vmatmul.f32.gmra.mxu0 %v808
      %v895 = vpop.f32.mrf.mxu0
      %v896 = vadd.f32 0.0, %v895
      %897 = vmatmul.f32.gmra.mxu0 %v810
      %v898 = vpop.f32.mrf.mxu0
      %v899 = vadd.f32 0.0, %v898
      %900 = vmatmul.f32.gmra.mxu0 %v812
      %v901 = vpop.f32.mrf.mxu0
      %v902 = vadd.f32 0.0, %v901
      %903 = vmatmul.f32.gmra.mxu0 %v814
      %v904 = vpop.f32.mrf.mxu0
      %v905 = vadd.f32 0.0, %v904
      %906 = vmatmul.f32.gmra.mxu0 %v816
      %v907 = vpop.f32.mrf.mxu0
      %v908 = vadd.f32 0.0, %v907
      %909 = vmatmul.f32.gmra.mxu0 %v818
      %v910 = vpop.f32.mrf.mxu0
      %v911 = vadd.f32 0.0, %v910
      %912 = vmatmul.f32.gmra.mxu0 %v820
      %v913 = vpop.f32.mrf.mxu0
      %v914 = vadd.f32 0.0, %v913
      %915 = vmatmul.f32.gmra.mxu0 %v822
      %v916 = vpop.f32.mrf.mxu0
      %v917 = vadd.f32 0.0, %v916
      %918 = vmatmul.f32.gmra.mxu0 %v824
      %v919 = vpop.f32.mrf.mxu0
      %v920 = vadd.f32 0.0, %v919
      %921 = vmatmul.f32.gmra.mxu0 %v826
      %v922 = vpop.f32.mrf.mxu0
      %v923 = vadd.f32 0.0, %v922
      %924 = vmatmul.f32.gmra.mxu0 %v828
      %v925 = vpop.f32.mrf.mxu0
      %v926 = vadd.f32 0.0, %v925
      %927 = vmatmul.f32.gmra.mxu0 %v830
      %v928 = vpop.f32.mrf.mxu0
      %v929 = vadd.f32 0.0, %v928
      %930 = vmatmul.f32.gmra.mxu0 %v832
      %v931 = vpop.f32.mrf.mxu0
      %v932 = vadd.f32 0.0, %v931
      %933 = vmatmul.f32.gmra.mxu0 %v834
      %v934 = vpop.f32.mrf.mxu0
      %v935 = vadd.f32 0.0, %v934
      %936 = vmatmul.f32.gmra.mxu0 %v836
      %v937 = vpop.f32.mrf.mxu0
      %v938 = vadd.f32 0.0, %v937
      %939 = vmatmul.f32.gmra.mxu0 %v838
      %v940 = vpop.f32.mrf.mxu0
      %v941 = vadd.f32 0.0, %v940
      %942 = vmatmul.f32.gmra.mxu0 %v840
      %v943 = vpop.f32.mrf.mxu0
      %v944 = vadd.f32 0.0, %v943
      %945 = vmatmul.f32.gmra.mxu0 %v842
      %v946 = vpop.f32.mrf.mxu0
      %v947 = vadd.f32 0.0, %v946
      %948 = vmatmul.f32.gmra.mxu0 %v844
      %v949 = vpop.f32.mrf.mxu0
      %v950 = vadd.f32 0.0, %v949
      %951 = vmatmul.f32.gmra.mxu0 %v846
      %v952 = vpop.f32.mrf.mxu0
      %v953 = vadd.f32 0.0, %v952
      %954 = vmatmul.f32.gmra.mxu0 %v848
      %v955 = vpop.f32.mrf.mxu0
      %v956 = vadd.f32 0.0, %v955
      %957 = vmatmul.f32.gmra.mxu0 %v850
      %v958 = vpop.f32.mrf.mxu0
      %v959 = vadd.f32 0.0, %v958
      %960 = vmatmul.f32.gmra.mxu0 %v852
      %v961 = vpop.f32.mrf.mxu0
      %v962 = vadd.f32 0.0, %v961
      %963 = vmatmul.f32.gmra.mxu0 %v854
      %v964 = vpop.f32.mrf.mxu0
      %v965 = vadd.f32 0.0, %v964
      %966 = vmatmul.f32.gmra.mxu0 %v856
      %v967 = vpop.f32.mrf.mxu0
      %v968 = vadd.f32 0.0, %v967
      %969 = vmatmul.f32.gmra.mxu0 %v858
      %v970 = vpop.f32.mrf.mxu0
      %v971 = vadd.f32 0.0, %v970
      %972 = vmatmul.f32.gmra.mxu0 %v860
      %v973 = vpop.f32.mrf.mxu0
      %v974 = vadd.f32 0.0, %v973
      %975 = vmatmul.f32.gmra.mxu0 %v862
      %v976 = vpop.f32.mrf.mxu0
      %v977 = vadd.f32 0.0, %v976
      %978 = vmatmul.f32.gmra.mxu0 %v864
      %v979 = vpop.f32.mrf.mxu0
      %v980 = vadd.f32 0.0, %v979
      %981 = vdwg.mxu0
      %v982 = vadd.f32 %v624, %v887
      %v983 = vadd.f32 %v627, %v890
      %v984 = vadd.f32 %v630, %v893
      %v985 = vadd.f32 %v633, %v896
      %v986 = vadd.f32 %v636, %v899
      %v987 = vadd.f32 %v639, %v902
      %v988 = vadd.f32 %v642, %v905
      %v989 = vadd.f32 %v645, %v908
      %v990 = vadd.f32 %v648, %v911
      %v991 = vadd.f32 %v651, %v914
      %v992 = vadd.f32 %v654, %v917
      %v993 = vadd.f32 %v657, %v920
      %v994 = vadd.f32 %v660, %v923
      %v995 = vadd.f32 %v663, %v926
      %v996 = vadd.f32 %v666, %v929
      %v997 = vadd.f32 %v669, %v932
      %v998 = vadd.f32 %v672, %v935
      %v999 = vadd.f32 %v675, %v938
      %v1000 = vadd.f32 %v678, %v941
      %v1001 = vadd.f32 %v681, %v944
      %v1002 = vadd.f32 %v684, %v947
      %v1003 = vadd.f32 %v687, %v950
      %v1004 = vadd.f32 %v690, %v953
      %v1005 = vadd.f32 %v693, %v956
      %v1006 = vadd.f32 %v696, %v959
      %v1007 = vadd.f32 %v699, %v962
      %v1008 = vadd.f32 %v702, %v965
      %v1009 = vadd.f32 %v705, %v968
      %v1010 = vadd.f32 %v708, %v971
      %v1011 = vadd.f32 %v711, %v974
      %v1012 = vadd.f32 %v714, %v977
      %v1013 = vadd.f32 %v717, %v980
      %s1014 = scalar_lea.vmem %s1, 12
      %v1015 = vld [vmem:[%s1014] sm:$0xf]
      %v1017 = vsel %vm357, %v219, 0
      %v1020 = vsel %vm357, %v220, 0
      %v1023 = vsel %vm422, %v1015, 0
      %1025 = vmatpush.msra.mxu0 0.0
      %1026 = vmatpush.msra.mxu0 0.0
      %1027 = vmatpush.msra.mxu0 0.0
      %1028 = vmatpush.msra.mxu0 0.0
      %1029 = vmatpush.msra.mxu0 0.0
      %1030 = vmatpush.msra.mxu0 0.0
      %1031 = vmatpush.msra.mxu0 0.0
      %1032 = vmatpush.msra.mxu0 0.0
      %1033 = vmatpush.msra.mxu0 0.0
      %1034 = vmatpush.msra.mxu0 0.0
      %1035 = vmatpush.msra.mxu0 0.0
      %1036 = vmatpush.msra.mxu0 0.0
      %1037 = vmatpush.msra.mxu0 0.0
      %1038 = vmatpush.msra.mxu0 0.0
      %1039 = vmatpush.msra.mxu0 0.0
      %1040 = vmatpush.msra.mxu0 %v1023
      %1041 = vmatmul.f32.gmra.mxu0 %v543
      %v1042 = vpop.f32.mrf.mxu0
      %v1043 = vadd.f32 0.0, %v1042
      %1044 = vmatmul.f32.gmra.mxu0 %v545
      %v1045 = vpop.f32.mrf.mxu0
      %v1046 = vadd.f32 0.0, %v1045
      %1047 = vmatmul.f32.gmra.mxu0 %v547
      %v1048 = vpop.f32.mrf.mxu0
      %v1049 = vadd.f32 0.0, %v1048
      %1050 = vmatmul.f32.gmra.mxu0 %v549
      %v1051 = vpop.f32.mrf.mxu0
      %v1052 = vadd.f32 0.0, %v1051
      %1053 = vmatmul.f32.gmra.mxu0 %v551
      %v1054 = vpop.f32.mrf.mxu0
      %v1055 = vadd.f32 0.0, %v1054
      %1056 = vmatmul.f32.gmra.mxu0 %v553
      %v1057 = vpop.f32.mrf.mxu0
      %v1058 = vadd.f32 0.0, %v1057
      %1059 = vmatmul.f32.gmra.mxu0 %v555
      %v1060 = vpop.f32.mrf.mxu0
      %v1061 = vadd.f32 0.0, %v1060
      %1062 = vmatmul.f32.gmra.mxu0 %v557
      %v1063 = vpop.f32.mrf.mxu0
      %v1064 = vadd.f32 0.0, %v1063
      %1065 = vmatmul.f32.gmra.mxu0 %v559
      %v1066 = vpop.f32.mrf.mxu0
      %v1067 = vadd.f32 0.0, %v1066
      %1068 = vmatmul.f32.gmra.mxu0 %v561
      %v1069 = vpop.f32.mrf.mxu0
      %v1070 = vadd.f32 0.0, %v1069
      %1071 = vmatmul.f32.gmra.mxu0 %v563
      %v1072 = vpop.f32.mrf.mxu0
      %v1073 = vadd.f32 0.0, %v1072
      %1074 = vmatmul.f32.gmra.mxu0 %v565
      %v1075 = vpop.f32.mrf.mxu0
      %v1076 = vadd.f32 0.0, %v1075
      %1077 = vmatmul.f32.gmra.mxu0 %v567
      %v1078 = vpop.f32.mrf.mxu0
      %v1079 = vadd.f32 0.0, %v1078
      %1080 = vmatmul.f32.gmra.mxu0 %v569
      %v1081 = vpop.f32.mrf.mxu0
      %v1082 = vadd.f32 0.0, %v1081
      %1083 = vmatmul.f32.gmra.mxu0 %v571
      %v1084 = vpop.f32.mrf.mxu0
      %v1085 = vadd.f32 0.0, %v1084
      %1086 = vmatmul.f32.gmra.mxu0 %v573
      %v1087 = vpop.f32.mrf.mxu0
      %v1088 = vadd.f32 0.0, %v1087
      %1089 = vmatmul.f32.gmra.mxu0 %v575
      %v1090 = vpop.f32.mrf.mxu0
      %v1091 = vadd.f32 0.0, %v1090
      %1092 = vmatmul.f32.gmra.mxu0 %v577
      %v1093 = vpop.f32.mrf.mxu0
      %v1094 = vadd.f32 0.0, %v1093
      %1095 = vmatmul.f32.gmra.mxu0 %v579
      %v1096 = vpop.f32.mrf.mxu0
      %v1097 = vadd.f32 0.0, %v1096
      %1098 = vmatmul.f32.gmra.mxu0 %v581
      %v1099 = vpop.f32.mrf.mxu0
      %v1100 = vadd.f32 0.0, %v1099
      %1101 = vmatmul.f32.gmra.mxu0 %v583
      %v1102 = vpop.f32.mrf.mxu0
      %v1103 = vadd.f32 0.0, %v1102
      %1104 = vmatmul.f32.gmra.mxu0 %v585
      %v1105 = vpop.f32.mrf.mxu0
      %v1106 = vadd.f32 0.0, %v1105
      %1107 = vmatmul.f32.gmra.mxu0 %v587
      %v1108 = vpop.f32.mrf.mxu0
      %v1109 = vadd.f32 0.0, %v1108
      %1110 = vmatmul.f32.gmra.mxu0 %v589
      %v1111 = vpop.f32.mrf.mxu0
      %v1112 = vadd.f32 0.0, %v1111
      %1113 = vmatmul.f32.gmra.mxu0 %v591
      %v1114 = vpop.f32.mrf.mxu0
      %v1115 = vadd.f32 0.0, %v1114
      %1116 = vmatmul.f32.gmra.mxu0 %v593
      %v1117 = vpop.f32.mrf.mxu0
      %v1118 = vadd.f32 0.0, %v1117
      %1119 = vmatmul.f32.gmra.mxu0 %v595
      %v1120 = vpop.f32.mrf.mxu0
      %v1121 = vadd.f32 0.0, %v1120
      %1122 = vmatmul.f32.gmra.mxu0 %v597
      %v1123 = vpop.f32.mrf.mxu0
      %v1124 = vadd.f32 0.0, %v1123
      %1125 = vmatmul.f32.gmra.mxu0 %v599
      %v1126 = vpop.f32.mrf.mxu0
      %v1127 = vadd.f32 0.0, %v1126
      %1128 = vmatmul.f32.gmra.mxu0 %v601
      %v1129 = vpop.f32.mrf.mxu0
      %v1130 = vadd.f32 0.0, %v1129
      %1131 = vmatmul.f32.gmra.mxu0 %v1017
      %v1132 = vpop.f32.mrf.mxu0
      %v1133 = vadd.f32 0.0, %v1132
      %1134 = vmatmul.f32.gmra.mxu0 %v1020
      %v1135 = vpop.f32.mrf.mxu0
      %v1136 = vadd.f32 0.0, %v1135
      %1137 = vdwg.mxu0
      %v1138 = vadd.f32 %v982, %v1043
      %v1139 = vadd.f32 %v983, %v1046
      %v1140 = vadd.f32 %v984, %v1049
      %v1141 = vadd.f32 %v985, %v1052
      %v1142 = vadd.f32 %v986, %v1055
      %v1143 = vadd.f32 %v987, %v1058
      %v1144 = vadd.f32 %v988, %v1061
      %v1145 = vadd.f32 %v989, %v1064
      %v1146 = vadd.f32 %v990, %v1067
      %v1147 = vadd.f32 %v991, %v1070
      %v1148 = vadd.f32 %v992, %v1073
      %v1149 = vadd.f32 %v993, %v1076
      %v1150 = vadd.f32 %v994, %v1079
      %v1151 = vadd.f32 %v995, %v1082
      %v1152 = vadd.f32 %v996, %v1085
      %v1153 = vadd.f32 %v997, %v1088
      %v1154 = vadd.f32 %v998, %v1091
      %v1155 = vadd.f32 %v999, %v1094
      %v1156 = vadd.f32 %v1000, %v1097
      %v1157 = vadd.f32 %v1001, %v1100
      %v1158 = vadd.f32 %v1002, %v1103
      %v1159 = vadd.f32 %v1003, %v1106
      %v1160 = vadd.f32 %v1004, %v1109
      %v1161 = vadd.f32 %v1005, %v1112
      %v1162 = vadd.f32 %v1006, %v1115
      %v1163 = vadd.f32 %v1007, %v1118
      %v1164 = vadd.f32 %v1008, %v1121
      %v1165 = vadd.f32 %v1009, %v1124
      %v1166 = vadd.f32 %v1010, %v1127
      %v1167 = vadd.f32 %v1011, %v1130
      %v1168 = vadd.f32 %v1012, %v1133
      %v1169 = vadd.f32 %v1013, %v1136
      %v1171 = vrot.slane %v219, 1
      %v1172 = vrot.slane %v220, 1
      %v1173 = vsel %vm274, %v1171, %v1172
      %v1174 = vrot.slane %v221, 1
      %v1175 = vsel %vm274, %v1172, %v1174
      %s1176 = scalar_lea.vmem %s1, 16
      %v1177 = vld [vmem:[%s1176] sm:$0xf]
      %v1178 = vsel %vm357, %v1173, 0
      %v1180 = vsel %vm357, %v1175, 0
      %v1183 = vsel %vm422, %v1177, 0
      %1185 = vmatpush.msra.mxu0 0.0
      %1186 = vmatpush.msra.mxu0 0.0
      %1187 = vmatpush.msra.mxu0 0.0
      %1188 = vmatpush.msra.mxu0 0.0
      %1189 = vmatpush.msra.mxu0 0.0
      %1190 = vmatpush.msra.mxu0 0.0
      %1191 = vmatpush.msra.mxu0 0.0
      %1192 = vmatpush.msra.mxu0 0.0
      %1193 = vmatpush.msra.mxu0 0.0
      %1194 = vmatpush.msra.mxu0 0.0
      %1195 = vmatpush.msra.mxu0 0.0
      %1196 = vmatpush.msra.mxu0 0.0
      %1197 = vmatpush.msra.mxu0 0.0
      %1198 = vmatpush.msra.mxu0 0.0
      %1199 = vmatpush.msra.mxu0 0.0
      %1200 = vmatpush.msra.mxu0 %v1183
      %1201 = vmatmul.f32.gmra.mxu0 %v362
      %v1202 = vpop.f32.mrf.mxu0
      %v1203 = vadd.f32 0.0, %v1202
      %1204 = vmatmul.f32.gmra.mxu0 %v364
      %v1205 = vpop.f32.mrf.mxu0
      %v1206 = vadd.f32 0.0, %v1205
      %1207 = vmatmul.f32.gmra.mxu0 %v366
      %v1208 = vpop.f32.mrf.mxu0
      %v1209 = vadd.f32 0.0, %v1208
      %1210 = vmatmul.f32.gmra.mxu0 %v368
      %v1211 = vpop.f32.mrf.mxu0
      %v1212 = vadd.f32 0.0, %v1211
      %1213 = vmatmul.f32.gmra.mxu0 %v370
      %v1214 = vpop.f32.mrf.mxu0
      %v1215 = vadd.f32 0.0, %v1214
      %1216 = vmatmul.f32.gmra.mxu0 %v372
      %v1217 = vpop.f32.mrf.mxu0
      %v1218 = vadd.f32 0.0, %v1217
      %1219 = vmatmul.f32.gmra.mxu0 %v374
      %v1220 = vpop.f32.mrf.mxu0
      %v1221 = vadd.f32 0.0, %v1220
      %1222 = vmatmul.f32.gmra.mxu0 %v376
      %v1223 = vpop.f32.mrf.mxu0
      %v1224 = vadd.f32 0.0, %v1223
      %1225 = vmatmul.f32.gmra.mxu0 %v378
      %v1226 = vpop.f32.mrf.mxu0
      %v1227 = vadd.f32 0.0, %v1226
      %1228 = vmatmul.f32.gmra.mxu0 %v380
      %v1229 = vpop.f32.mrf.mxu0
      %v1230 = vadd.f32 0.0, %v1229
      %1231 = vmatmul.f32.gmra.mxu0 %v382
      %v1232 = vpop.f32.mrf.mxu0
      %v1233 = vadd.f32 0.0, %v1232
      %1234 = vmatmul.f32.gmra.mxu0 %v384
      %v1235 = vpop.f32.mrf.mxu0
      %v1236 = vadd.f32 0.0, %v1235
      %1237 = vmatmul.f32.gmra.mxu0 %v386
      %v1238 = vpop.f32.mrf.mxu0
      %v1239 = vadd.f32 0.0, %v1238
      %1240 = vmatmul.f32.gmra.mxu0 %v388
      %v1241 = vpop.f32.mrf.mxu0
      %v1242 = vadd.f32 0.0, %v1241
      %1243 = vmatmul.f32.gmra.mxu0 %v390
      %v1244 = vpop.f32.mrf.mxu0
      %v1245 = vadd.f32 0.0, %v1244
      %1246 = vmatmul.f32.gmra.mxu0 %v392
      %v1247 = vpop.f32.mrf.mxu0
      %v1248 = vadd.f32 0.0, %v1247
      %1249 = vmatmul.f32.gmra.mxu0 %v394
      %v1250 = vpop.f32.mrf.mxu0
      %v1251 = vadd.f32 0.0, %v1250
      %1252 = vmatmul.f32.gmra.mxu0 %v396
      %v1253 = vpop.f32.mrf.mxu0
      %v1254 = vadd.f32 0.0, %v1253
      %1255 = vmatmul.f32.gmra.mxu0 %v398
      %v1256 = vpop.f32.mrf.mxu0
      %v1257 = vadd.f32 0.0, %v1256
      %1258 = vmatmul.f32.gmra.mxu0 %v400
      %v1259 = vpop.f32.mrf.mxu0
      %v1260 = vadd.f32 0.0, %v1259
      %1261 = vmatmul.f32.gmra.mxu0 %v402
      %v1262 = vpop.f32.mrf.mxu0
      %v1263 = vadd.f32 0.0, %v1262
      %1264 = vmatmul.f32.gmra.mxu0 %v404
      %v1265 = vpop.f32.mrf.mxu0
      %v1266 = vadd.f32 0.0, %v1265
      %1267 = vmatmul.f32.gmra.mxu0 %v406
      %v1268 = vpop.f32.mrf.mxu0
      %v1269 = vadd.f32 0.0, %v1268
      %1270 = vmatmul.f32.gmra.mxu0 %v408
      %v1271 = vpop.f32.mrf.mxu0
      %v1272 = vadd.f32 0.0, %v1271
      %1273 = vmatmul.f32.gmra.mxu0 %v410
      %v1274 = vpop.f32.mrf.mxu0
      %v1275 = vadd.f32 0.0, %v1274
      %1276 = vmatmul.f32.gmra.mxu0 %v412
      %v1277 = vpop.f32.mrf.mxu0
      %v1278 = vadd.f32 0.0, %v1277
      %1279 = vmatmul.f32.gmra.mxu0 %v414
      %v1280 = vpop.f32.mrf.mxu0
      %v1281 = vadd.f32 0.0, %v1280
      %1282 = vmatmul.f32.gmra.mxu0 %v416
      %v1283 = vpop.f32.mrf.mxu0
      %v1284 = vadd.f32 0.0, %v1283
      %1285 = vmatmul.f32.gmra.mxu0 %v418
      %v1286 = vpop.f32.mrf.mxu0
      %v1287 = vadd.f32 0.0, %v1286
      %1288 = vmatmul.f32.gmra.mxu0 %v420
      %v1289 = vpop.f32.mrf.mxu0
      %v1290 = vadd.f32 0.0, %v1289
      %1291 = vmatmul.f32.gmra.mxu0 %v1178
      %v1292 = vpop.f32.mrf.mxu0
      %v1293 = vadd.f32 0.0, %v1292
      %1294 = vmatmul.f32.gmra.mxu0 %v1180
      %v1295 = vpop.f32.mrf.mxu0
      %v1296 = vadd.f32 0.0, %v1295
      %1297 = vdwg.mxu0
      %v1298 = vadd.f32 %v1138, %v1203
      %v1299 = vadd.f32 %v1139, %v1206
      %v1300 = vadd.f32 %v1140, %v1209
      %v1301 = vadd.f32 %v1141, %v1212
      %v1302 = vadd.f32 %v1142, %v1215
      %v1303 = vadd.f32 %v1143, %v1218
      %v1304 = vadd.f32 %v1144, %v1221
      %v1305 = vadd.f32 %v1145, %v1224
      %v1306 = vadd.f32 %v1146, %v1227
      %v1307 = vadd.f32 %v1147, %v1230
      %v1308 = vadd.f32 %v1148, %v1233
      %v1309 = vadd.f32 %v1149, %v1236
      %v1310 = vadd.f32 %v1150, %v1239
      %v1311 = vadd.f32 %v1151, %v1242
      %v1312 = vadd.f32 %v1152, %v1245
      %v1313 = vadd.f32 %v1153, %v1248
      %v1314 = vadd.f32 %v1154, %v1251
      %v1315 = vadd.f32 %v1155, %v1254
      %v1316 = vadd.f32 %v1156, %v1257
      %v1317 = vadd.f32 %v1157, %v1260
      %v1318 = vadd.f32 %v1158, %v1263
      %v1319 = vadd.f32 %v1159, %v1266
      %v1320 = vadd.f32 %v1160, %v1269
      %v1321 = vadd.f32 %v1161, %v1272
      %v1322 = vadd.f32 %v1162, %v1275
      %v1323 = vadd.f32 %v1163, %v1278
      %v1324 = vadd.f32 %v1164, %v1281
      %v1325 = vadd.f32 %v1165, %v1284
      %v1326 = vadd.f32 %v1166, %v1287
      %v1327 = vadd.f32 %v1167, %v1290
      %v1328 = vadd.f32 %v1168, %v1293
      %v1329 = vadd.f32 %v1169, %v1296
      %v1330 = vrot.slane %v219, 2
      %v1331 = vrot.slane %v220, 2
      %v1332 = vsel %vm719, %v1330, %v1331
      %v1333 = vrot.slane %v221, 2
      %v1334 = vsel %vm719, %v1331, %v1333
      %s1335 = scalar_lea.vmem %s1, 20
      %v1336 = vld [vmem:[%s1335] sm:$0xf]
      %v1337 = vsel %vm357, %v1332, 0
      %v1339 = vsel %vm357, %v1334, 0
      %v1342 = vsel %vm422, %v1336, 0
      %1344 = vmatpush.msra.mxu0 0.0
      %1345 = vmatpush.msra.mxu0 0.0
      %1346 = vmatpush.msra.mxu0 0.0
      %1347 = vmatpush.msra.mxu0 0.0
      %1348 = vmatpush.msra.mxu0 0.0
      %1349 = vmatpush.msra.mxu0 0.0
      %1350 = vmatpush.msra.mxu0 0.0
      %1351 = vmatpush.msra.mxu0 0.0
      %1352 = vmatpush.msra.mxu0 0.0
      %1353 = vmatpush.msra.mxu0 0.0
      %1354 = vmatpush.msra.mxu0 0.0
      %1355 = vmatpush.msra.mxu0 0.0
      %1356 = vmatpush.msra.mxu0 0.0
      %1357 = vmatpush.msra.mxu0 0.0
      %1358 = vmatpush.msra.mxu0 0.0
      %1359 = vmatpush.msra.mxu0 %v1342
      %1360 = vmatmul.f32.gmra.mxu0 %v806
      %v1361 = vpop.f32.mrf.mxu0
      %v1362 = vadd.f32 0.0, %v1361
      %1363 = vmatmul.f32.gmra.mxu0 %v808
      %v1364 = vpop.f32.mrf.mxu0
      %v1365 = vadd.f32 0.0, %v1364
      %1366 = vmatmul.f32.gmra.mxu0 %v810
      %v1367 = vpop.f32.mrf.mxu0
      %v1368 = vadd.f32 0.0, %v1367
      %1369 = vmatmul.f32.gmra.mxu0 %v812
      %v1370 = vpop.f32.mrf.mxu0
      %v1371 = vadd.f32 0.0, %v1370
      %1372 = vmatmul.f32.gmra.mxu0 %v814
      %v1373 = vpop.f32.mrf.mxu0
      %v1374 = vadd.f32 0.0, %v1373
      %1375 = vmatmul.f32.gmra.mxu0 %v816
      %v1376 = vpop.f32.mrf.mxu0
      %v1377 = vadd.f32 0.0, %v1376
      %1378 = vmatmul.f32.gmra.mxu0 %v818
      %v1379 = vpop.f32.mrf.mxu0
      %v1380 = vadd.f32 0.0, %v1379
      %1381 = vmatmul.f32.gmra.mxu0 %v820
      %v1382 = vpop.f32.mrf.mxu0
      %v1383 = vadd.f32 0.0, %v1382
      %1384 = vmatmul.f32.gmra.mxu0 %v822
      %v1385 = vpop.f32.mrf.mxu0
      %v1386 = vadd.f32 0.0, %v1385
      %1387 = vmatmul.f32.gmra.mxu0 %v824
      %v1388 = vpop.f32.mrf.mxu0
      %v1389 = vadd.f32 0.0, %v1388
      %1390 = vmatmul.f32.gmra.mxu0 %v826
      %v1391 = vpop.f32.mrf.mxu0
      %v1392 = vadd.f32 0.0, %v1391
      %1393 = vmatmul.f32.gmra.mxu0 %v828
      %v1394 = vpop.f32.mrf.mxu0
      %v1395 = vadd.f32 0.0, %v1394
      %1396 = vmatmul.f32.gmra.mxu0 %v830
      %v1397 = vpop.f32.mrf.mxu0
      %v1398 = vadd.f32 0.0, %v1397
      %1399 = vmatmul.f32.gmra.mxu0 %v832
      %v1400 = vpop.f32.mrf.mxu0
      %v1401 = vadd.f32 0.0, %v1400
      %1402 = vmatmul.f32.gmra.mxu0 %v834
      %v1403 = vpop.f32.mrf.mxu0
      %v1404 = vadd.f32 0.0, %v1403
      %1405 = vmatmul.f32.gmra.mxu0 %v836
      %v1406 = vpop.f32.mrf.mxu0
      %v1407 = vadd.f32 0.0, %v1406
      %1408 = vmatmul.f32.gmra.mxu0 %v838
      %v1409 = vpop.f32.mrf.mxu0
      %v1410 = vadd.f32 0.0, %v1409
      %1411 = vmatmul.f32.gmra.mxu0 %v840
      %v1412 = vpop.f32.mrf.mxu0
      %v1413 = vadd.f32 0.0, %v1412
      %1414 = vmatmul.f32.gmra.mxu0 %v842
      %v1415 = vpop.f32.mrf.mxu0
      %v1416 = vadd.f32 0.0, %v1415
      %1417 = vmatmul.f32.gmra.mxu0 %v844
      %v1418 = vpop.f32.mrf.mxu0
      %v1419 = vadd.f32 0.0, %v1418
      %1420 = vmatmul.f32.gmra.mxu0 %v846
      %v1421 = vpop.f32.mrf.mxu0
      %v1422 = vadd.f32 0.0, %v1421
      %1423 = vmatmul.f32.gmra.mxu0 %v848
      %v1424 = vpop.f32.mrf.mxu0
      %v1425 = vadd.f32 0.0, %v1424
      %1426 = vmatmul.f32.gmra.mxu0 %v850
      %v1427 = vpop.f32.mrf.mxu0
      %v1428 = vadd.f32 0.0, %v1427
      %1429 = vmatmul.f32.gmra.mxu0 %v852
      %v1430 = vpop.f32.mrf.mxu0
      %v1431 = vadd.f32 0.0, %v1430
      %1432 = vmatmul.f32.gmra.mxu0 %v854
      %v1433 = vpop.f32.mrf.mxu0
      %v1434 = vadd.f32 0.0, %v1433
      %1435 = vmatmul.f32.gmra.mxu0 %v856
      %v1436 = vpop.f32.mrf.mxu0
      %v1437 = vadd.f32 0.0, %v1436
      %1438 = vmatmul.f32.gmra.mxu0 %v858
      %v1439 = vpop.f32.mrf.mxu0
      %v1440 = vadd.f32 0.0, %v1439
      %1441 = vmatmul.f32.gmra.mxu0 %v860
      %v1442 = vpop.f32.mrf.mxu0
      %v1443 = vadd.f32 0.0, %v1442
      %1444 = vmatmul.f32.gmra.mxu0 %v862
      %v1445 = vpop.f32.mrf.mxu0
      %v1446 = vadd.f32 0.0, %v1445
      %1447 = vmatmul.f32.gmra.mxu0 %v864
      %v1448 = vpop.f32.mrf.mxu0
      %v1449 = vadd.f32 0.0, %v1448
      %1450 = vmatmul.f32.gmra.mxu0 %v1337
      %v1451 = vpop.f32.mrf.mxu0
      %v1452 = vadd.f32 0.0, %v1451
      %1453 = vmatmul.f32.gmra.mxu0 %v1339
      %v1454 = vpop.f32.mrf.mxu0
      %v1455 = vadd.f32 0.0, %v1454
      %1456 = vdwg.mxu0
      %v1457 = vadd.f32 %v1298, %v1362
      %v1458 = vadd.f32 %v1299, %v1365
      %v1459 = vadd.f32 %v1300, %v1368
      %v1460 = vadd.f32 %v1301, %v1371
      %v1461 = vadd.f32 %v1302, %v1374
      %v1462 = vadd.f32 %v1303, %v1377
      %v1463 = vadd.f32 %v1304, %v1380
      %v1464 = vadd.f32 %v1305, %v1383
      %v1465 = vadd.f32 %v1306, %v1386
      %v1466 = vadd.f32 %v1307, %v1389
      %v1467 = vadd.f32 %v1308, %v1392
      %v1468 = vadd.f32 %v1309, %v1395
      %v1469 = vadd.f32 %v1310, %v1398
      %v1470 = vadd.f32 %v1311, %v1401
      %v1471 = vadd.f32 %v1312, %v1404
      %v1472 = vadd.f32 %v1313, %v1407
      %v1473 = vadd.f32 %v1314, %v1410
      %v1474 = vadd.f32 %v1315, %v1413
      %v1475 = vadd.f32 %v1316, %v1416
      %v1476 = vadd.f32 %v1317, %v1419
      %v1477 = vadd.f32 %v1318, %v1422
      %v1478 = vadd.f32 %v1319, %v1425
      %v1479 = vadd.f32 %v1320, %v1428
      %v1480 = vadd.f32 %v1321, %v1431
      %v1481 = vadd.f32 %v1322, %v1434
      %v1482 = vadd.f32 %v1323, %v1437
      %v1483 = vadd.f32 %v1324, %v1440
      %v1484 = vadd.f32 %v1325, %v1443
      %v1485 = vadd.f32 %v1326, %v1446
      %v1486 = vadd.f32 %v1327, %v1449
      %v1487 = vadd.f32 %v1328, %v1452
      %v1488 = vadd.f32 %v1329, %v1455
      %s1489 = scalar_lea.vmem %s1, 24
      %v1490 = vld [vmem:[%s1489] sm:$0xf]
      %v1492 = vsel %vm357, %v222, 0
      %v1495 = vsel %vm357, %v223, 0
      %v1498 = vsel %vm422, %v1490, 0
      %1500 = vmatpush.msra.mxu0 0.0
      %1501 = vmatpush.msra.mxu0 0.0
      %1502 = vmatpush.msra.mxu0 0.0
      %1503 = vmatpush.msra.mxu0 0.0
      %1504 = vmatpush.msra.mxu0 0.0
      %1505 = vmatpush.msra.mxu0 0.0
      %1506 = vmatpush.msra.mxu0 0.0
      %1507 = vmatpush.msra.mxu0 0.0
      %1508 = vmatpush.msra.mxu0 0.0
      %1509 = vmatpush.msra.mxu0 0.0
      %1510 = vmatpush.msra.mxu0 0.0
      %1511 = vmatpush.msra.mxu0 0.0
      %1512 = vmatpush.msra.mxu0 0.0
      %1513 = vmatpush.msra.mxu0 0.0
      %1514 = vmatpush.msra.mxu0 0.0
      %1515 = vmatpush.msra.mxu0 %v1498
      %1516 = vmatmul.f32.gmra.mxu0 %v547
      %v1517 = vpop.f32.mrf.mxu0
      %v1518 = vadd.f32 0.0, %v1517
      %1519 = vmatmul.f32.gmra.mxu0 %v549
      %v1520 = vpop.f32.mrf.mxu0
      %v1521 = vadd.f32 0.0, %v1520
      %1522 = vmatmul.f32.gmra.mxu0 %v551
      %v1523 = vpop.f32.mrf.mxu0
      %v1524 = vadd.f32 0.0, %v1523
      %1525 = vmatmul.f32.gmra.mxu0 %v553
      %v1526 = vpop.f32.mrf.mxu0
      %v1527 = vadd.f32 0.0, %v1526
      %1528 = vmatmul.f32.gmra.mxu0 %v555
      %v1529 = vpop.f32.mrf.mxu0
      %v1530 = vadd.f32 0.0, %v1529
      %1531 = vmatmul.f32.gmra.mxu0 %v557
      %v1532 = vpop.f32.mrf.mxu0
      %v1533 = vadd.f32 0.0, %v1532
      %1534 = vmatmul.f32.gmra.mxu0 %v559
      %v1535 = vpop.f32.mrf.mxu0
      %v1536 = vadd.f32 0.0, %v1535
      %1537 = vmatmul.f32.gmra.mxu0 %v561
      %v1538 = vpop.f32.mrf.mxu0
      %v1539 = vadd.f32 0.0, %v1538
      %1540 = vmatmul.f32.gmra.mxu0 %v563
      %v1541 = vpop.f32.mrf.mxu0
      %v1542 = vadd.f32 0.0, %v1541
      %1543 = vmatmul.f32.gmra.mxu0 %v565
      %v1544 = vpop.f32.mrf.mxu0
      %v1545 = vadd.f32 0.0, %v1544
      %1546 = vmatmul.f32.gmra.mxu0 %v567
      %v1547 = vpop.f32.mrf.mxu0
      %v1548 = vadd.f32 0.0, %v1547
      %1549 = vmatmul.f32.gmra.mxu0 %v569
      %v1550 = vpop.f32.mrf.mxu0
      %v1551 = vadd.f32 0.0, %v1550
      %1552 = vmatmul.f32.gmra.mxu0 %v571
      %v1553 = vpop.f32.mrf.mxu0
      %v1554 = vadd.f32 0.0, %v1553
      %1555 = vmatmul.f32.gmra.mxu0 %v573
      %v1556 = vpop.f32.mrf.mxu0
      %v1557 = vadd.f32 0.0, %v1556
      %1558 = vmatmul.f32.gmra.mxu0 %v575
      %v1559 = vpop.f32.mrf.mxu0
      %v1560 = vadd.f32 0.0, %v1559
      %1561 = vmatmul.f32.gmra.mxu0 %v577
      %v1562 = vpop.f32.mrf.mxu0
      %v1563 = vadd.f32 0.0, %v1562
      %1564 = vmatmul.f32.gmra.mxu0 %v579
      %v1565 = vpop.f32.mrf.mxu0
      %v1566 = vadd.f32 0.0, %v1565
      %1567 = vmatmul.f32.gmra.mxu0 %v581
      %v1568 = vpop.f32.mrf.mxu0
      %v1569 = vadd.f32 0.0, %v1568
      %1570 = vmatmul.f32.gmra.mxu0 %v583
      %v1571 = vpop.f32.mrf.mxu0
      %v1572 = vadd.f32 0.0, %v1571
      %1573 = vmatmul.f32.gmra.mxu0 %v585
      %v1574 = vpop.f32.mrf.mxu0
      %v1575 = vadd.f32 0.0, %v1574
      %1576 = vmatmul.f32.gmra.mxu0 %v587
      %v1577 = vpop.f32.mrf.mxu0
      %v1578 = vadd.f32 0.0, %v1577
      %1579 = vmatmul.f32.gmra.mxu0 %v589
      %v1580 = vpop.f32.mrf.mxu0
      %v1581 = vadd.f32 0.0, %v1580
      %1582 = vmatmul.f32.gmra.mxu0 %v591
      %v1583 = vpop.f32.mrf.mxu0
      %v1584 = vadd.f32 0.0, %v1583
      %1585 = vmatmul.f32.gmra.mxu0 %v593
      %v1586 = vpop.f32.mrf.mxu0
      %v1587 = vadd.f32 0.0, %v1586
      %1588 = vmatmul.f32.gmra.mxu0 %v595
      %v1589 = vpop.f32.mrf.mxu0
      %v1590 = vadd.f32 0.0, %v1589
      %1591 = vmatmul.f32.gmra.mxu0 %v597
      %v1592 = vpop.f32.mrf.mxu0
      %v1593 = vadd.f32 0.0, %v1592
      %1594 = vmatmul.f32.gmra.mxu0 %v599
      %v1595 = vpop.f32.mrf.mxu0
      %v1596 = vadd.f32 0.0, %v1595
      %1597 = vmatmul.f32.gmra.mxu0 %v601
      %v1598 = vpop.f32.mrf.mxu0
      %v1599 = vadd.f32 0.0, %v1598
      %1600 = vmatmul.f32.gmra.mxu0 %v1017
      %v1601 = vpop.f32.mrf.mxu0
      %v1602 = vadd.f32 0.0, %v1601
      %1603 = vmatmul.f32.gmra.mxu0 %v1020
      %v1604 = vpop.f32.mrf.mxu0
      %v1605 = vadd.f32 0.0, %v1604
      %1606 = vmatmul.f32.gmra.mxu0 %v1492
      %v1607 = vpop.f32.mrf.mxu0
      %v1608 = vadd.f32 0.0, %v1607
      %1609 = vmatmul.f32.gmra.mxu0 %v1495
      %v1610 = vpop.f32.mrf.mxu0
      %v1611 = vadd.f32 0.0, %v1610
      %1612 = vdwg.mxu0
      %v1613 = vadd.f32 %v1457, %v1518
      %v1614 = vadd.f32 %v1458, %v1521
      %v1615 = vadd.f32 %v1459, %v1524
      %v1616 = vadd.f32 %v1460, %v1527
      %v1617 = vadd.f32 %v1461, %v1530
      %v1618 = vadd.f32 %v1462, %v1533
      %v1619 = vadd.f32 %v1463, %v1536
      %v1620 = vadd.f32 %v1464, %v1539
      %v1621 = vadd.f32 %v1465, %v1542
      %v1622 = vadd.f32 %v1466, %v1545
      %v1623 = vadd.f32 %v1467, %v1548
      %v1624 = vadd.f32 %v1468, %v1551
      %v1625 = vadd.f32 %v1469, %v1554
      %v1626 = vadd.f32 %v1470, %v1557
      %v1627 = vadd.f32 %v1471, %v1560
      %v1628 = vadd.f32 %v1472, %v1563
      %v1629 = vadd.f32 %v1473, %v1566
      %v1630 = vadd.f32 %v1474, %v1569
      %v1631 = vadd.f32 %v1475, %v1572
      %v1632 = vadd.f32 %v1476, %v1575
      %v1633 = vadd.f32 %v1477, %v1578
      %v1634 = vadd.f32 %v1478, %v1581
      %v1635 = vadd.f32 %v1479, %v1584
      %v1636 = vadd.f32 %v1480, %v1587
      %v1637 = vadd.f32 %v1481, %v1590
      %v1638 = vadd.f32 %v1482, %v1593
      %v1639 = vadd.f32 %v1483, %v1596
      %v1640 = vadd.f32 %v1484, %v1599
      %v1641 = vadd.f32 %v1485, %v1602
      %v1642 = vadd.f32 %v1486, %v1605
      %v1643 = vadd.f32 %v1487, %v1608
      %v1644 = vadd.f32 %v1488, %v1611
      %v1646 = vrot.slane %v222, 1
      %v1647 = vrot.slane %v223, 1
      %v1648 = vsel %vm274, %v1646, %v1647
      %v1649 = vrot.slane %v224, 1
      %v1650 = vsel %vm274, %v1647, %v1649
      %s1651 = scalar_lea.vmem %s1, 28
      %v1652 = vld [vmem:[%s1651] sm:$0xf]
      %v1653 = vsel %vm357, %v1648, 0
      %v1655 = vsel %vm357, %v1650, 0
      %v1658 = vsel %vm422, %v1652, 0
      %1660 = vmatpush.msra.mxu0 0.0
      %1661 = vmatpush.msra.mxu0 0.0
      %1662 = vmatpush.msra.mxu0 0.0
      %1663 = vmatpush.msra.mxu0 0.0
      %1664 = vmatpush.msra.mxu0 0.0
      %1665 = vmatpush.msra.mxu0 0.0
      %1666 = vmatpush.msra.mxu0 0.0
      %1667 = vmatpush.msra.mxu0 0.0
      %1668 = vmatpush.msra.mxu0 0.0
      %1669 = vmatpush.msra.mxu0 0.0
      %1670 = vmatpush.msra.mxu0 0.0
      %1671 = vmatpush.msra.mxu0 0.0
      %1672 = vmatpush.msra.mxu0 0.0
      %1673 = vmatpush.msra.mxu0 0.0
      %1674 = vmatpush.msra.mxu0 0.0
      %1675 = vmatpush.msra.mxu0 %v1658
      %1676 = vmatmul.f32.gmra.mxu0 %v366
      %v1677 = vpop.f32.mrf.mxu0
      %v1678 = vadd.f32 0.0, %v1677
      %1679 = vmatmul.f32.gmra.mxu0 %v368
      %v1680 = vpop.f32.mrf.mxu0
      %v1681 = vadd.f32 0.0, %v1680
      %1682 = vmatmul.f32.gmra.mxu0 %v370
      %v1683 = vpop.f32.mrf.mxu0
      %v1684 = vadd.f32 0.0, %v1683
      %1685 = vmatmul.f32.gmra.mxu0 %v372
      %v1686 = vpop.f32.mrf.mxu0
      %v1687 = vadd.f32 0.0, %v1686
      %1688 = vmatmul.f32.gmra.mxu0 %v374
      %v1689 = vpop.f32.mrf.mxu0
      %v1690 = vadd.f32 0.0, %v1689
      %1691 = vmatmul.f32.gmra.mxu0 %v376
      %v1692 = vpop.f32.mrf.mxu0
      %v1693 = vadd.f32 0.0, %v1692
      %1694 = vmatmul.f32.gmra.mxu0 %v378
      %v1695 = vpop.f32.mrf.mxu0
      %v1696 = vadd.f32 0.0, %v1695
      %1697 = vmatmul.f32.gmra.mxu0 %v380
      %v1698 = vpop.f32.mrf.mxu0
      %v1699 = vadd.f32 0.0, %v1698
      %1700 = vmatmul.f32.gmra.mxu0 %v382
      %v1701 = vpop.f32.mrf.mxu0
      %v1702 = vadd.f32 0.0, %v1701
      %1703 = vmatmul.f32.gmra.mxu0 %v384
      %v1704 = vpop.f32.mrf.mxu0
      %v1705 = vadd.f32 0.0, %v1704
      %1706 = vmatmul.f32.gmra.mxu0 %v386
      %v1707 = vpop.f32.mrf.mxu0
      %v1708 = vadd.f32 0.0, %v1707
      %1709 = vmatmul.f32.gmra.mxu0 %v388
      %v1710 = vpop.f32.mrf.mxu0
      %v1711 = vadd.f32 0.0, %v1710
      %1712 = vmatmul.f32.gmra.mxu0 %v390
      %v1713 = vpop.f32.mrf.mxu0
      %v1714 = vadd.f32 0.0, %v1713
      %1715 = vmatmul.f32.gmra.mxu0 %v392
      %v1716 = vpop.f32.mrf.mxu0
      %v1717 = vadd.f32 0.0, %v1716
      %1718 = vmatmul.f32.gmra.mxu0 %v394
      %v1719 = vpop.f32.mrf.mxu0
      %v1720 = vadd.f32 0.0, %v1719
      %1721 = vmatmul.f32.gmra.mxu0 %v396
      %v1722 = vpop.f32.mrf.mxu0
      %v1723 = vadd.f32 0.0, %v1722
      %1724 = vmatmul.f32.gmra.mxu0 %v398
      %v1725 = vpop.f32.mrf.mxu0
      %v1726 = vadd.f32 0.0, %v1725
      %1727 = vmatmul.f32.gmra.mxu0 %v400
      %v1728 = vpop.f32.mrf.mxu0
      %v1729 = vadd.f32 0.0, %v1728
      %1730 = vmatmul.f32.gmra.mxu0 %v402
      %v1731 = vpop.f32.mrf.mxu0
      %v1732 = vadd.f32 0.0, %v1731
      %1733 = vmatmul.f32.gmra.mxu0 %v404
      %v1734 = vpop.f32.mrf.mxu0
      %v1735 = vadd.f32 0.0, %v1734
      %1736 = vmatmul.f32.gmra.mxu0 %v406
      %v1737 = vpop.f32.mrf.mxu0
      %v1738 = vadd.f32 0.0, %v1737
      %1739 = vmatmul.f32.gmra.mxu0 %v408
      %v1740 = vpop.f32.mrf.mxu0
      %v1741 = vadd.f32 0.0, %v1740
      %1742 = vmatmul.f32.gmra.mxu0 %v410
      %v1743 = vpop.f32.mrf.mxu0
      %v1744 = vadd.f32 0.0, %v1743
      %1745 = vmatmul.f32.gmra.mxu0 %v412
      %v1746 = vpop.f32.mrf.mxu0
      %v1747 = vadd.f32 0.0, %v1746
      %1748 = vmatmul.f32.gmra.mxu0 %v414
      %v1749 = vpop.f32.mrf.mxu0
      %v1750 = vadd.f32 0.0, %v1749
      %1751 = vmatmul.f32.gmra.mxu0 %v416
      %v1752 = vpop.f32.mrf.mxu0
      %v1753 = vadd.f32 0.0, %v1752
      %1754 = vmatmul.f32.gmra.mxu0 %v418
      %v1755 = vpop.f32.mrf.mxu0
      %v1756 = vadd.f32 0.0, %v1755
      %1757 = vmatmul.f32.gmra.mxu0 %v420
      %v1758 = vpop.f32.mrf.mxu0
      %v1759 = vadd.f32 0.0, %v1758
      %1760 = vmatmul.f32.gmra.mxu0 %v1178
      %v1761 = vpop.f32.mrf.mxu0
      %v1762 = vadd.f32 0.0, %v1761
      %1763 = vmatmul.f32.gmra.mxu0 %v1180
      %v1764 = vpop.f32.mrf.mxu0
      %v1765 = vadd.f32 0.0, %v1764
      %1766 = vmatmul.f32.gmra.mxu0 %v1653
      %v1767 = vpop.f32.mrf.mxu0
      %v1768 = vadd.f32 0.0, %v1767
      %1769 = vmatmul.f32.gmra.mxu0 %v1655
      %v1770 = vpop.f32.mrf.mxu0
      %v1771 = vadd.f32 0.0, %v1770
      %1772 = vdwg.mxu0
      %v1773 = vadd.f32 %v1613, %v1678
      %v1774 = vadd.f32 %v1614, %v1681
      %v1775 = vadd.f32 %v1615, %v1684
      %v1776 = vadd.f32 %v1616, %v1687
      %v1777 = vadd.f32 %v1617, %v1690
      %v1778 = vadd.f32 %v1618, %v1693
      %v1779 = vadd.f32 %v1619, %v1696
      %v1780 = vadd.f32 %v1620, %v1699
      %v1781 = vadd.f32 %v1621, %v1702
      %v1782 = vadd.f32 %v1622, %v1705
      %v1783 = vadd.f32 %v1623, %v1708
      %v1784 = vadd.f32 %v1624, %v1711
      %v1785 = vadd.f32 %v1625, %v1714
      %v1786 = vadd.f32 %v1626, %v1717
      %v1787 = vadd.f32 %v1627, %v1720
      %v1788 = vadd.f32 %v1628, %v1723
      %v1789 = vadd.f32 %v1629, %v1726
      %v1790 = vadd.f32 %v1630, %v1729
      %v1791 = vadd.f32 %v1631, %v1732
      %v1792 = vadd.f32 %v1632, %v1735
      %v1793 = vadd.f32 %v1633, %v1738
      %v1794 = vadd.f32 %v1634, %v1741
      %v1795 = vadd.f32 %v1635, %v1744
      %v1796 = vadd.f32 %v1636, %v1747
      %v1797 = vadd.f32 %v1637, %v1750
      %v1798 = vadd.f32 %v1638, %v1753
      %v1799 = vadd.f32 %v1639, %v1756
      %v1800 = vadd.f32 %v1640, %v1759
      %v1801 = vadd.f32 %v1641, %v1762
      %v1802 = vadd.f32 %v1642, %v1765
      %v1803 = vadd.f32 %v1643, %v1768
      %v1804 = vadd.f32 %v1644, %v1771
      %v1805 = vrot.slane %v222, 2
      %v1806 = vrot.slane %v223, 2
      %v1807 = vsel %vm719, %v1805, %v1806
      %v1808 = vrot.slane %v224, 2
      %v1809 = vsel %vm719, %v1806, %v1808
      %s1810 = scalar_lea.vmem %s1, 32
      %v1811 = vld [vmem:[%s1810] sm:$0xf]
      %v1812 = vsel %vm357, %v1807, 0
      %v1814 = vsel %vm357, %v1809, 0
      %v1817 = vsel %vm422, %v1811, 0
      %1819 = vmatpush.msra.mxu0 0.0
      %1820 = vmatpush.msra.mxu0 0.0
      %1821 = vmatpush.msra.mxu0 0.0
      %1822 = vmatpush.msra.mxu0 0.0
      %1823 = vmatpush.msra.mxu0 0.0
      %1824 = vmatpush.msra.mxu0 0.0
      %1825 = vmatpush.msra.mxu0 0.0
      %1826 = vmatpush.msra.mxu0 0.0
      %1827 = vmatpush.msra.mxu0 0.0
      %1828 = vmatpush.msra.mxu0 0.0
      %1829 = vmatpush.msra.mxu0 0.0
      %1830 = vmatpush.msra.mxu0 0.0
      %1831 = vmatpush.msra.mxu0 0.0
      %1832 = vmatpush.msra.mxu0 0.0
      %1833 = vmatpush.msra.mxu0 0.0
      %1834 = vmatpush.msra.mxu0 %v1817
      %1835 = vmatmul.f32.gmra.mxu0 %v810
      %v1836 = vpop.f32.mrf.mxu0
      %v1837 = vadd.f32 0.0, %v1836
      %1838 = vmatmul.f32.gmra.mxu0 %v812
      %v1839 = vpop.f32.mrf.mxu0
      %v1840 = vadd.f32 0.0, %v1839
      %1841 = vmatmul.f32.gmra.mxu0 %v814
      %v1842 = vpop.f32.mrf.mxu0
      %v1843 = vadd.f32 0.0, %v1842
      %1844 = vmatmul.f32.gmra.mxu0 %v816
      %v1845 = vpop.f32.mrf.mxu0
      %v1846 = vadd.f32 0.0, %v1845
      %1847 = vmatmul.f32.gmra.mxu0 %v818
      %v1848 = vpop.f32.mrf.mxu0
      %v1849 = vadd.f32 0.0, %v1848
      %1850 = vmatmul.f32.gmra.mxu0 %v820
      %v1851 = vpop.f32.mrf.mxu0
      %v1852 = vadd.f32 0.0, %v1851
      %1853 = vmatmul.f32.gmra.mxu0 %v822
      %v1854 = vpop.f32.mrf.mxu0
      %v1855 = vadd.f32 0.0, %v1854
      %1856 = vmatmul.f32.gmra.mxu0 %v824
      %v1857 = vpop.f32.mrf.mxu0
      %v1858 = vadd.f32 0.0, %v1857
      %1859 = vmatmul.f32.gmra.mxu0 %v826
      %v1860 = vpop.f32.mrf.mxu0
      %v1861 = vadd.f32 0.0, %v1860
      %1862 = vmatmul.f32.gmra.mxu0 %v828
      %v1863 = vpop.f32.mrf.mxu0
      %v1864 = vadd.f32 0.0, %v1863
      %1865 = vmatmul.f32.gmra.mxu0 %v830
      %v1866 = vpop.f32.mrf.mxu0
      %v1867 = vadd.f32 0.0, %v1866
      %1868 = vmatmul.f32.gmra.mxu0 %v832
      %v1869 = vpop.f32.mrf.mxu0
      %v1870 = vadd.f32 0.0, %v1869
      %1871 = vmatmul.f32.gmra.mxu0 %v834
      %v1872 = vpop.f32.mrf.mxu0
      %v1873 = vadd.f32 0.0, %v1872
      %1874 = vmatmul.f32.gmra.mxu0 %v836
      %v1875 = vpop.f32.mrf.mxu0
      %v1876 = vadd.f32 0.0, %v1875
      %1877 = vmatmul.f32.gmra.mxu0 %v838
      %v1878 = vpop.f32.mrf.mxu0
      %v1879 = vadd.f32 0.0, %v1878
      %1880 = vmatmul.f32.gmra.mxu0 %v840
      %v1881 = vpop.f32.mrf.mxu0
      %v1882 = vadd.f32 0.0, %v1881
      %1883 = vmatmul.f32.gmra.mxu0 %v842
      %v1884 = vpop.f32.mrf.mxu0
      %v1885 = vadd.f32 0.0, %v1884
      %1886 = vmatmul.f32.gmra.mxu0 %v844
      %v1887 = vpop.f32.mrf.mxu0
      %v1888 = vadd.f32 0.0, %v1887
      %1889 = vmatmul.f32.gmra.mxu0 %v846
      %v1890 = vpop.f32.mrf.mxu0
      %v1891 = vadd.f32 0.0, %v1890
      %1892 = vmatmul.f32.gmra.mxu0 %v848
      %v1893 = vpop.f32.mrf.mxu0
      %v1894 = vadd.f32 0.0, %v1893
      %1895 = vmatmul.f32.gmra.mxu0 %v850
      %v1896 = vpop.f32.mrf.mxu0
      %v1897 = vadd.f32 0.0, %v1896
      %1898 = vmatmul.f32.gmra.mxu0 %v852
      %v1899 = vpop.f32.mrf.mxu0
      %v1900 = vadd.f32 0.0, %v1899
      %1901 = vmatmul.f32.gmra.mxu0 %v854
      %v1902 = vpop.f32.mrf.mxu0
      %v1903 = vadd.f32 0.0, %v1902
      %1904 = vmatmul.f32.gmra.mxu0 %v856
      %v1905 = vpop.f32.mrf.mxu0
      %v1906 = vadd.f32 0.0, %v1905
      %1907 = vmatmul.f32.gmra.mxu0 %v858
      %v1908 = vpop.f32.mrf.mxu0
      %v1909 = vadd.f32 0.0, %v1908
      %1910 = vmatmul.f32.gmra.mxu0 %v860
      %v1911 = vpop.f32.mrf.mxu0
      %v1912 = vadd.f32 0.0, %v1911
      %1913 = vmatmul.f32.gmra.mxu0 %v862
      %v1914 = vpop.f32.mrf.mxu0
      %v1915 = vadd.f32 0.0, %v1914
      %1916 = vmatmul.f32.gmra.mxu0 %v864
      %v1917 = vpop.f32.mrf.mxu0
      %v1918 = vadd.f32 0.0, %v1917
      %1919 = vmatmul.f32.gmra.mxu0 %v1337
      %v1920 = vpop.f32.mrf.mxu0
      %v1921 = vadd.f32 0.0, %v1920
      %1922 = vmatmul.f32.gmra.mxu0 %v1339
      %v1923 = vpop.f32.mrf.mxu0
      %v1924 = vadd.f32 0.0, %v1923
      %1925 = vmatmul.f32.gmra.mxu0 %v1812
      %v1926 = vpop.f32.mrf.mxu0
      %v1927 = vadd.f32 0.0, %v1926
      %1928 = vmatmul.f32.gmra.mxu0 %v1814
      %v1929 = vpop.f32.mrf.mxu0
      %v1930 = vadd.f32 0.0, %v1929
      %1931 = vdwg.mxu0
      %v1932 = vadd.f32 %v1773, %v1837
      %v1933 = vadd.f32 %v1774, %v1840
      %v1934 = vadd.f32 %v1775, %v1843
      %v1935 = vadd.f32 %v1776, %v1846
      %v1936 = vadd.f32 %v1777, %v1849
      %v1937 = vadd.f32 %v1778, %v1852
      %v1938 = vadd.f32 %v1779, %v1855
      %v1939 = vadd.f32 %v1780, %v1858
      %v1940 = vadd.f32 %v1781, %v1861
      %v1941 = vadd.f32 %v1782, %v1864
      %v1942 = vadd.f32 %v1783, %v1867
      %v1943 = vadd.f32 %v1784, %v1870
      %v1944 = vadd.f32 %v1785, %v1873
      %v1945 = vadd.f32 %v1786, %v1876
      %v1946 = vadd.f32 %v1787, %v1879
      %v1947 = vadd.f32 %v1788, %v1882
      %v1948 = vadd.f32 %v1789, %v1885
      %v1949 = vadd.f32 %v1790, %v1888
      %v1950 = vadd.f32 %v1791, %v1891
      %v1951 = vadd.f32 %v1792, %v1894
      %v1952 = vadd.f32 %v1793, %v1897
      %v1953 = vadd.f32 %v1794, %v1900
      %v1954 = vadd.f32 %v1795, %v1903
      %v1955 = vadd.f32 %v1796, %v1906
      %v1956 = vadd.f32 %v1797, %v1909
      %v1957 = vadd.f32 %v1798, %v1912
      %v1958 = vadd.f32 %v1799, %v1915
      %v1959 = vadd.f32 %v1800, %v1918
      %v1960 = vadd.f32 %v1801, %v1921
      %v1961 = vadd.f32 %v1802, %v1924
      %v1962 = vadd.f32 %v1803, %v1927
      %v1963 = vadd.f32 %v1804, %v1930
      %v1964 = vld [vmem:[%s2] sm:$0x1]
      %v1966 = vperm.slane %v1964, 0
      %v1968 = vadd.f32 %v1932, %v1966
      %v1969 = vadd.f32 %v1933, %v1966
      %v1970 = vadd.f32 %v1934, %v1966
      %v1971 = vadd.f32 %v1935, %v1966
      %v1972 = vadd.f32 %v1936, %v1966
      %v1973 = vadd.f32 %v1937, %v1966
      %v1974 = vadd.f32 %v1938, %v1966
      %v1975 = vadd.f32 %v1939, %v1966
      %v1976 = vadd.f32 %v1940, %v1966
      %v1977 = vadd.f32 %v1941, %v1966
      %v1978 = vadd.f32 %v1942, %v1966
      %v1979 = vadd.f32 %v1943, %v1966
      %v1980 = vadd.f32 %v1944, %v1966
      %v1981 = vadd.f32 %v1945, %v1966
      %v1982 = vadd.f32 %v1946, %v1966
      %v1983 = vadd.f32 %v1947, %v1966
      %v1984 = vadd.f32 %v1948, %v1966
      %v1985 = vadd.f32 %v1949, %v1966
      %v1986 = vadd.f32 %v1950, %v1966
      %v1987 = vadd.f32 %v1951, %v1966
      %v1988 = vadd.f32 %v1952, %v1966
      %v1989 = vadd.f32 %v1953, %v1966
      %v1990 = vadd.f32 %v1954, %v1966
      %v1991 = vadd.f32 %v1955, %v1966
      %v1992 = vadd.f32 %v1956, %v1966
      %v1993 = vadd.f32 %v1957, %v1966
      %v1994 = vadd.f32 %v1958, %v1966
      %v1995 = vadd.f32 %v1959, %v1966
      %v1996 = vadd.f32 %v1960, %v1966
      %v1997 = vadd.f32 %v1961, %v1966
      %v1998 = vadd.f32 %v1962, %v1966
      %v1999 = vadd.f32 %v1963, %v1966
      %v2000 = vmax.f32 %v1968, 0.0
      %v2001 = vmax.f32 %v1969, 0.0
      %v2002 = vmax.f32 %v1970, 0.0
      %v2003 = vmax.f32 %v1971, 0.0
      %v2004 = vmax.f32 %v1972, 0.0
      %v2005 = vmax.f32 %v1973, 0.0
      %v2006 = vmax.f32 %v1974, 0.0
      %v2007 = vmax.f32 %v1975, 0.0
      %v2008 = vmax.f32 %v1976, 0.0
      %v2009 = vmax.f32 %v1977, 0.0
      %v2010 = vmax.f32 %v1978, 0.0
      %v2011 = vmax.f32 %v1979, 0.0
      %v2012 = vmax.f32 %v1980, 0.0
      %v2013 = vmax.f32 %v1981, 0.0
      %v2014 = vmax.f32 %v1982, 0.0
      %v2015 = vmax.f32 %v1983, 0.0
      %v2016 = vmax.f32 %v1984, 0.0
      %v2017 = vmax.f32 %v1985, 0.0
      %v2018 = vmax.f32 %v1986, 0.0
      %v2019 = vmax.f32 %v1987, 0.0
      %v2020 = vmax.f32 %v1988, 0.0
      %v2021 = vmax.f32 %v1989, 0.0
      %v2022 = vmax.f32 %v1990, 0.0
      %v2023 = vmax.f32 %v1991, 0.0
      %v2024 = vmax.f32 %v1992, 0.0
      %v2025 = vmax.f32 %v1993, 0.0
      %v2026 = vmax.f32 %v1994, 0.0
      %v2027 = vmax.f32 %v1995, 0.0
      %v2028 = vmax.f32 %v1996, 0.0
      %v2029 = vmax.f32 %v1997, 0.0
      %v2030 = vmax.f32 %v1998, 0.0
      %v2031 = vmax.f32 %v1999, 0.0
      %vm2032 = vcmask 130048
      %2033 = vst.msk [vmem:[%s170] sm:$0xff] %vm2032, %v2000
      %2034 = vst.msk [vmem:[%s170 + $0x8] sm:$0xff] %vm2032, %v2001
      %2035 = vst.msk [vmem:[%s170 + $0x10] sm:$0xff] %vm2032, %v2002
      %2036 = vst.msk [vmem:[%s170 + $0x18] sm:$0xff] %vm2032, %v2003
      %2037 = vst.msk [vmem:[%s170 + $0x20] sm:$0xff] %vm2032, %v2004
      %2038 = vst.msk [vmem:[%s170 + $0x28] sm:$0xff] %vm2032, %v2005
      %2039 = vst.msk [vmem:[%s170 + $0x30] sm:$0xff] %vm2032, %v2006
      %2040 = vst.msk [vmem:[%s170 + $0x38] sm:$0xff] %vm2032, %v2007
      %2041 = vst.msk [vmem:[%s170 + $0x40] sm:$0xff] %vm2032, %v2008
      %2042 = vst.msk [vmem:[%s170 + $0x48] sm:$0xff] %vm2032, %v2009
      %2043 = vst.msk [vmem:[%s170 + $0x50] sm:$0xff] %vm2032, %v2010
      %2044 = vst.msk [vmem:[%s170 + $0x58] sm:$0xff] %vm2032, %v2011
      %2045 = vst.msk [vmem:[%s170 + $0x60] sm:$0xff] %vm2032, %v2012
      %2046 = vst.msk [vmem:[%s170 + $0x68] sm:$0xff] %vm2032, %v2013
      %2047 = vst.msk [vmem:[%s170 + $0x70] sm:$0xff] %vm2032, %v2014
      %2048 = vst.msk [vmem:[%s170 + $0x78] sm:$0xff] %vm2032, %v2015
      %2049 = vst.msk [vmem:[%s170 + $0x80] sm:$0xff] %vm2032, %v2016
      %2050 = vst.msk [vmem:[%s170 + $0x88] sm:$0xff] %vm2032, %v2017
      %2051 = vst.msk [vmem:[%s170 + $0x90] sm:$0xff] %vm2032, %v2018
      %2052 = vst.msk [vmem:[%s170 + $0x98] sm:$0xff] %vm2032, %v2019
      %2053 = vst.msk [vmem:[%s170 + $0xa0] sm:$0xff] %vm2032, %v2020
      %2054 = vst.msk [vmem:[%s170 + $0xa8] sm:$0xff] %vm2032, %v2021
      %2055 = vst.msk [vmem:[%s170 + $0xb0] sm:$0xff] %vm2032, %v2022
      %2056 = vst.msk [vmem:[%s170 + $0xb8] sm:$0xff] %vm2032, %v2023
      %2057 = vst.msk [vmem:[%s170 + $0xc0] sm:$0xff] %vm2032, %v2024
      %2058 = vst.msk [vmem:[%s170 + $0xc8] sm:$0xff] %vm2032, %v2025
      %2059 = vst.msk [vmem:[%s170 + $0xd0] sm:$0xff] %vm2032, %v2026
      %2060 = vst.msk [vmem:[%s170 + $0xd8] sm:$0xff] %vm2032, %v2027
      %2061 = vst.msk [vmem:[%s170 + $0xe0] sm:$0xff] %vm2032, %v2028
      %2062 = vst.msk [vmem:[%s170 + $0xe8] sm:$0xff] %vm2032, %v2029
      %2063 = vst.msk [vmem:[%s170 + $0xf0] sm:$0xff] %vm2032, %v2030
      %2064 = vst.msk [vmem:[%s170 + $0xf8] sm:$0xff] %vm2032, %v2031
      %p2065 = scmp.lt.s32.totalorder %s14, 1
      %s2066 = scalar_select %p2065, %s14, 1
      %s2067 = smul.addr %s2066, 32
      %s2068 = smul.addr %s2067, 8
      %s2069 = scalar_lea.vmem %s3, %s2068
      // Predicated region
      $region33: #{tpu_custom_call.1} parent=31 // pred_check
        %p2070 = pneg %p100
      $region34: #{tpu_custom_call.1} parent=31 // pred_check_branch
        %2072 = sbr.rel (%p2070) target = $region36
      $region35: #{tpu_custom_call.1} parent=31 // pred_region
        _
      $region36: #{tpu_custom_call.1} parent=31 // pred_fallthru
        _
    $region32: #{tpu_custom_call.1} parent=5 // pred_fallthru
      _
    %p2073 = scmp.le.s32.totalorder 2, %s9
    // Predicated region
    $region37: #{tpu_custom_call.1} parent=5 // pred_check
      %p2074 = pneg %p2073
    $region38: #{tpu_custom_call.1} parent=5 // pred_check_branch
      %2076 = sbr.rel (%p2074) target = $region40
    $region39: #{tpu_custom_call.1} parent=5 // pred_region
      %s2077 = ssub.s32 %s9, 2
      // Predicated region
      $region41: #{tpu_custom_call.1} parent=39 // pred_check
        %p2078 = pneg %p106
      $region42: #{tpu_custom_call.1} parent=39 // pred_check_branch
        %2080 = sbr.rel (%p2078) target = $region44
      $region43: #{tpu_custom_call.1} parent=39 // pred_region
        %p2081 = scmp.lt.s32.totalorder %s15, 1
        %s2082 = scalar_select %p2081, %s15, 1
        %s2083 = smul.addr %s2082, 32
        %s2084 = smul.addr %s2083, 8
        %s2085 = scalar_lea.vmem %s3, %s2084
      $region44: #{tpu_custom_call.1} parent=39 // pred_fallthru
        _
    $region40: #{tpu_custom_call.1} parent=5 // pred_fallthru
      _
  $region6: #{tpu_custom_call.1} parent=0 // loop_footer
    %s13 = sadd.s32 1, %s9
  $region7: #{tpu_custom_call.1} parent=0 // loop_footer_branch
    %8 = sbr.rel target = $region3
  $region8: #{tpu_custom_call.1} parent=0 // loop_exit
    _

</llo_original>
